<compile_context>
chip_gen: v5e
topology: v5e:2x2
jax: 0.10.0
libtpu: 0.0.40
codegen_flags: <defaults>
</compile_context>

<pallas_src>
import jax
import jax.numpy as jnp
from jax.experimental import pallas as pl
from jax.experimental.pallas import tpu as pltpu


def _round_up(x, m):
    return ((x + m - 1) // m) * m


def _mlp_kernel(inp_ref,
                w1, b1, w2, b2, w3, b3, w4, b4, w5, b5, w6, b6,
                out_ref):
    """Fused 6-layer MLP on one (tb, 2) batch tile; weights stay VMEM-resident."""
    inp = inp_ref[...]                       # (tb, 2)  f32
    w1v = w1[...]                            # (2, H)   f32

    # Layer 1: K=2 contraction -> two broadcast FMAs on the (otherwise idle)
    # VPU; keeps the MXU free for the wide hidden layers.
    h = inp[:, 0:1] * w1v[0:1, :] + inp[:, 1:2] * w1v[1:2, :] + b1[...]
    h = jnp.maximum(h, 0.0)

    def linear(h, w_ref, b_ref):
        return jnp.dot(h.astype(w_ref.dtype), w_ref[...],
                       preferred_element_type=jnp.float32) + b_ref[...]

    h = jnp.maximum(linear(h, w2, b2), 0.0)
    h = jnp.maximum(linear(h, w3, b3), 0.0)
    h = jnp.maximum(linear(h, w4, b4), 0.0)
    h = jnp.maximum(linear(h, w5, b5), 0.0)
    out_ref[...] = linear(h, w6, b6).astype(out_ref.dtype)   # final layer, no ReLU


def mushydata_forward(x, t, params, *, batch_tile=512,
                      compute_dtype=jnp.bfloat16):
    """JAX wrapper replicating Mushydata.forward(x, t).

    compute_dtype: dtype fed to the MXU for the hidden/output layers
    (accumulation is always f32). Use jnp.float32 for exact module numerics.
    """
    inp = jnp.concatenate([x.astype(jnp.float32), t.astype(jnp.float32)], axis=1)
    n, in_feat = inp.shape
    assert in_feat == 2, "Mushydata concatenates x,t columns -> 2 input features"

    hidden = params["w1"].shape[1]
    out_feat = params["w6"].shape[1]

    H = _round_up(hidden, 256)        # MXU/lane-pad hidden dim (zero pad: exact)
    O = _round_up(out_feat, 128)      # lane-dense output slab

    # Batch tiling: multiples of 128; pad the batch to a whole number of tiles.
    tb = min(_round_up(max(batch_tile, 1), 128), _round_up(n, 128))
    n_pad = _round_up(n, tb)
    if n_pad != n:
        inp = jnp.pad(inp, ((0, n_pad - n), (0, 0)))

    def pad2(a, rows, cols):
        return jnp.pad(a, ((0, rows - a.shape[0]), (0, cols - a.shape[1])))

    def pad1(a, cols):
        return jnp.pad(a, (0, cols - a.shape[0])).reshape(1, cols)

    # Layer-1 weights stay f32 (VPU path); hidden/output matmul weights go to
    # compute_dtype; biases stay f32 (added after the f32 accumulation).
    weight_args = [pad2(params["w1"], 2, H).astype(jnp.float32),
                   pad1(params["b1"], H).astype(jnp.float32)]
    for layer in range(2, 6):
        weight_args += [pad2(params[f"w{layer}"], H, H).astype(compute_dtype),
                        pad1(params[f"b{layer}"], H).astype(jnp.float32)]
    weight_args += [pad2(params["w6"], H, O).astype(compute_dtype),
                    pad1(params["b6"], O).astype(jnp.float32)]

    def full_spec(shape):
        # Constant index_map: weights stay resident in VMEM across grid steps.
        return pl.BlockSpec(shape, lambda i: (0, 0))

    in_specs = [pl.BlockSpec((tb, 2), lambda i: (i, 0))]
    in_specs += [full_spec(a.shape) for a in weight_args]

    out = pl.pallas_call(
        _mlp_kernel,
        out_shape=jax.ShapeDtypeStruct((n_pad, O), jnp.float32),
        grid_spec=pltpu.PrefetchScalarGridSpec(
            num_scalar_prefetch=0,
            grid=(n_pad // tb,),
            in_specs=in_specs,
            out_specs=pl.BlockSpec((tb, O), lambda i: (i, 0)),
        ),
        compiler_params=pltpu.CompilerParams(
            dimension_semantics=("parallel",)),
    )(inp, *weight_args)

    return out[:n, :out_feat]


def init_params(key, input_size, hidden_size, output_size):
    """Deterministic init mimicking PyTorch nn.Linear defaults
    (uniform(-1/sqrt(fan_in), 1/sqrt(fan_in))); weights stored (in, out)."""
    dims = [input_size] + [hidden_size] * 5 + [output_size]
    params = {}
    keys = jax.random.split(key, 12)
    for layer in range(6):
        fan_in, fan_out = dims[layer], dims[layer + 1]
        bound = 1.0 / (fan_in ** 0.5)
        params[f"w{layer + 1}"] = jax.random.uniform(
            keys[2 * layer], (fan_in, fan_out), jnp.float32, -bound, bound)
        params[f"b{layer + 1}"] = jax.random.uniform(
            keys[2 * layer + 1], (fan_out,), jnp.float32, -bound, bound)
    return params


def reference_forward(x, t, params, compute_dtype=jnp.float32):
    """Pure-JAX reference; with compute_dtype matching the kernel it is a
    matched-precision check, with f32 it is the original PyTorch numerics."""
    h = jnp.concatenate([x, t], axis=1).astype(jnp.float32)
    h = jnp.maximum(
        jnp.dot(h, params["w1"], precision=jax.lax.Precision.HIGHEST)
        + params["b1"], 0.0)
    for layer in range(2, 7):
        w = params[f"w{layer}"].astype(compute_dtype)
        y = jnp.dot(h.astype(compute_dtype), w,
                    preferred_element_type=jnp.float32,
                    precision=jax.lax.Precision.HIGHEST) + params[f"b{layer}"]
        h = jnp.maximum(y, 0.0) if layer < 6 else y
    return h


if __name__ == "__main__":
    # Mushydata(input_size=2, hidden_size=200, output_size=1); small demo batch.
    input_size, hidden_size, output_size = 2, 200, 1
    batch = 300   # deliberately not tile-aligned: exercises batch padding + grid>1

    key = jax.random.PRNGKey(0)
    kx, kt, kp = jax.random.split(key, 3)
    x = jax.random.normal(kx, (batch, 1), jnp.float32)
    t = jax.random.normal(kt, (batch, 1), jnp.float32)
    params = init_params(kp, input_size, hidden_size, output_size)

    # bf16-matmul (fast) path; 128-row tiles -> 3-step grid on this small demo.
    out_bf16 = mushydata_forward(x, t, params, batch_tile=128,
                                 compute_dtype=jnp.bfloat16)
    out_bf16 = jax.block_until_ready(out_bf16)
    assert out_bf16.shape == (batch, output_size)

    ref_bf16 = reference_forward(x, t, params, compute_dtype=jnp.bfloat16)
    assert jnp.allclose(out_bf16, ref_bf16, atol=1e-3, rtol=1e-2), \
        "bf16 kernel mismatch vs matched-precision reference"

    # Full-f32 path: faithful to the PyTorch module numerics.
    out_f32 = mushydata_forward(x, t, params, batch_tile=128,
                                compute_dtype=jnp.float32)
    out_f32 = jax.block_until_ready(out_f32)
    ref_f32 = reference_forward(x, t, params, compute_dtype=jnp.float32)
    assert jnp.allclose(out_f32, ref_f32, atol=2e-4, rtol=1e-3), \
        "f32 kernel mismatch vs f32 reference"

    # bf16 path should still track the f32 model closely for this PINN-sized MLP.
    err = float(jnp.max(jnp.abs(out_bf16 - ref_f32)))
    assert err < 5e-2, "bf16 kernel drifted too far from f32 reference"

    print("KERNEL_OK")
</pallas_src>

<mosaic_0001>
module attributes {stable_mosaic.version = 11 : i64} {
  func.func @_mlp_kernel(%arg0: i32, %arg1: memref<128x2xf32, #tpu.memory_space<vmem>>, %arg2: memref<2x256xf32, #tpu.memory_space<vmem>>, %arg3: memref<1x256xf32, #tpu.memory_space<vmem>>, %arg4: memref<256x256xbf16, #tpu.memory_space<vmem>>, %arg5: memref<1x256xf32, #tpu.memory_space<vmem>>, %arg6: memref<256x256xbf16, #tpu.memory_space<vmem>>, %arg7: memref<1x256xf32, #tpu.memory_space<vmem>>, %arg8: memref<256x256xbf16, #tpu.memory_space<vmem>>, %arg9: memref<1x256xf32, #tpu.memory_space<vmem>>, %arg10: memref<256x256xbf16, #tpu.memory_space<vmem>>, %arg11: memref<1x256xf32, #tpu.memory_space<vmem>>, %arg12: memref<256x128xbf16, #tpu.memory_space<vmem>>, %arg13: memref<1x128xf32, #tpu.memory_space<vmem>>, %arg14: memref<128x128xf32, #tpu.memory_space<vmem>>) attributes {dimension_semantics = [#tpu.dimension_semantics<parallel>], iteration_bounds = array<i64: 3>, scalar_prefetch = 0 : i64, scratch_operands = 0 : i64, tpu.core_type = #tpu.core_type<tc>, window_params = [{transform_indices = @transform_0, window_bounds = array<i64: 128, 2>}, {pipeline_mode = #tpu.pipeline_mode<synchronous>, transform_indices = @transform_1, window_bounds = array<i64: 2, 256>}, {pipeline_mode = #tpu.pipeline_mode<synchronous>, transform_indices = @transform_2, window_bounds = array<i64: 1, 256>}, {pipeline_mode = #tpu.pipeline_mode<synchronous>, transform_indices = @transform_3, window_bounds = array<i64: 256, 256>}, {pipeline_mode = #tpu.pipeline_mode<synchronous>, transform_indices = @transform_4, window_bounds = array<i64: 1, 256>}, {pipeline_mode = #tpu.pipeline_mode<synchronous>, transform_indices = @transform_5, window_bounds = array<i64: 256, 256>}, {pipeline_mode = #tpu.pipeline_mode<synchronous>, transform_indices = @transform_6, window_bounds = array<i64: 1, 256>}, {pipeline_mode = #tpu.pipeline_mode<synchronous>, transform_indices = @transform_7, window_bounds = array<i64: 256, 256>}, {pipeline_mode = #tpu.pipeline_mode<synchronous>, transform_indices = @transform_8, window_bounds = array<i64: 1, 256>}, {pipeline_mode = #tpu.pipeline_mode<synchronous>, transform_indices = @transform_9, window_bounds = array<i64: 256, 256>}, {pipeline_mode = #tpu.pipeline_mode<synchronous>, transform_indices = @transform_10, window_bounds = array<i64: 1, 256>}, {pipeline_mode = #tpu.pipeline_mode<synchronous>, transform_indices = @transform_11, window_bounds = array<i64: 256, 128>}, {pipeline_mode = #tpu.pipeline_mode<synchronous>, transform_indices = @transform_12, window_bounds = array<i64: 1, 128>}, {transform_indices = @transform_13, window_bounds = array<i64: 128, 128>}]} {
    %c0 = arith.constant 0 : index
    %c0_0 = arith.constant 0 : index
    %0 = vector.load %arg1[%c0, %c0_0] : memref<128x2xf32, #tpu.memory_space<vmem>>, vector<128x2xf32>
    %c0_1 = arith.constant 0 : index
    %c0_2 = arith.constant 0 : index
    %1 = vector.load %arg2[%c0_1, %c0_2] : memref<2x256xf32, #tpu.memory_space<vmem>>, vector<2x256xf32>
    %2 = vector.extract_strided_slice %0 {offsets = [0, 0], sizes = [128, 1], strides = [1, 1]} : vector<128x2xf32> to vector<128x1xf32>
    %3 = vector.extract_strided_slice %1 {offsets = [0, 0], sizes = [1, 256], strides = [1, 1]} : vector<2x256xf32> to vector<1x256xf32>
    %4 = vector.broadcast %2 : vector<128x1xf32> to vector<128x256xf32>
    %5 = vector.broadcast %3 : vector<1x256xf32> to vector<128x256xf32>
    %6 = arith.mulf %4, %5 : vector<128x256xf32>
    %7 = vector.extract_strided_slice %0 {offsets = [0, 1], sizes = [128, 1], strides = [1, 1]} : vector<128x2xf32> to vector<128x1xf32>
    %8 = vector.extract_strided_slice %1 {offsets = [1, 0], sizes = [1, 256], strides = [1, 1]} : vector<2x256xf32> to vector<1x256xf32>
    %9 = vector.broadcast %7 : vector<128x1xf32> to vector<128x256xf32>
    %10 = vector.broadcast %8 : vector<1x256xf32> to vector<128x256xf32>
    %11 = arith.mulf %9, %10 : vector<128x256xf32>
    %12 = arith.addf %6, %11 : vector<128x256xf32>
    %c0_3 = arith.constant 0 : index
    %c0_4 = arith.constant 0 : index
    %13 = vector.load %arg3[%c0_3, %c0_4] : memref<1x256xf32, #tpu.memory_space<vmem>>, vector<1x256xf32>
    %14 = vector.broadcast %13 : vector<1x256xf32> to vector<128x256xf32>
    %15 = arith.addf %12, %14 : vector<128x256xf32>
    %cst = arith.constant 0.000000e+00 : f32
    %16 = vector.broadcast %cst : f32 to vector<128x256xf32>
    %17 = arith.maximumf %15, %16 : vector<128x256xf32>
    %18 = arith.truncf %17 : vector<128x256xf32> to vector<128x256xbf16>
    %c0_5 = arith.constant 0 : index
    %c0_6 = arith.constant 0 : index
    %19 = vector.load %arg4[%c0_5, %c0_6] : memref<256x256xbf16, #tpu.memory_space<vmem>>, vector<256x256xbf16>
    %cst_7 = arith.constant dense<0.000000e+00> : vector<128x256xf32>
    %20 = tpu.matmul %18, %19, %cst_7 {dimension_numbers = #tpu.dot_dimension_numbers<[1], [0], [0], [1], [0, 0, 1, 1], [], []>} : vector<128x256xbf16>, vector<256x256xbf16>, vector<128x256xf32> -> vector<128x256xf32>
    %c0_8 = arith.constant 0 : index
    %c0_9 = arith.constant 0 : index
    %21 = vector.load %arg5[%c0_8, %c0_9] : memref<1x256xf32, #tpu.memory_space<vmem>>, vector<1x256xf32>
    %22 = vector.broadcast %21 : vector<1x256xf32> to vector<128x256xf32>
    %23 = arith.addf %20, %22 : vector<128x256xf32>
    %cst_10 = arith.constant 0.000000e+00 : f32
    %24 = vector.broadcast %cst_10 : f32 to vector<128x256xf32>
    %25 = arith.maximumf %23, %24 : vector<128x256xf32>
    %26 = arith.truncf %25 : vector<128x256xf32> to vector<128x256xbf16>
    %c0_11 = arith.constant 0 : index
    %c0_12 = arith.constant 0 : index
    %27 = vector.load %arg6[%c0_11, %c0_12] : memref<256x256xbf16, #tpu.memory_space<vmem>>, vector<256x256xbf16>
    %cst_13 = arith.constant dense<0.000000e+00> : vector<128x256xf32>
    %28 = tpu.matmul %26, %27, %cst_13 {dimension_numbers = #tpu.dot_dimension_numbers<[1], [0], [0], [1], [0, 0, 1, 1], [], []>} : vector<128x256xbf16>, vector<256x256xbf16>, vector<128x256xf32> -> vector<128x256xf32>
    %c0_14 = arith.constant 0 : index
    %c0_15 = arith.constant 0 : index
    %29 = vector.load %arg7[%c0_14, %c0_15] : memref<1x256xf32, #tpu.memory_space<vmem>>, vector<1x256xf32>
    %30 = vector.broadcast %29 : vector<1x256xf32> to vector<128x256xf32>
    %31 = arith.addf %28, %30 : vector<128x256xf32>
    %cst_16 = arith.constant 0.000000e+00 : f32
    %32 = vector.broadcast %cst_16 : f32 to vector<128x256xf32>
    %33 = arith.maximumf %31, %32 : vector<128x256xf32>
    %34 = arith.truncf %33 : vector<128x256xf32> to vector<128x256xbf16>
    %c0_17 = arith.constant 0 : index
    %c0_18 = arith.constant 0 : index
    %35 = vector.load %arg8[%c0_17, %c0_18] : memref<256x256xbf16, #tpu.memory_space<vmem>>, vector<256x256xbf16>
    %cst_19 = arith.constant dense<0.000000e+00> : vector<128x256xf32>
    %36 = tpu.matmul %34, %35, %cst_19 {dimension_numbers = #tpu.dot_dimension_numbers<[1], [0], [0], [1], [0, 0, 1, 1], [], []>} : vector<128x256xbf16>, vector<256x256xbf16>, vector<128x256xf32> -> vector<128x256xf32>
    %c0_20 = arith.constant 0 : index
    %c0_21 = arith.constant 0 : index
    %37 = vector.load %arg9[%c0_20, %c0_21] : memref<1x256xf32, #tpu.memory_space<vmem>>, vector<1x256xf32>
    %38 = vector.broadcast %37 : vector<1x256xf32> to vector<128x256xf32>
    %39 = arith.addf %36, %38 : vector<128x256xf32>
    %cst_22 = arith.constant 0.000000e+00 : f32
    %40 = vector.broadcast %cst_22 : f32 to vector<128x256xf32>
    %41 = arith.maximumf %39, %40 : vector<128x256xf32>
    %42 = arith.truncf %41 : vector<128x256xf32> to vector<128x256xbf16>
    %c0_23 = arith.constant 0 : index
    %c0_24 = arith.constant 0 : index
    %43 = vector.load %arg10[%c0_23, %c0_24] : memref<256x256xbf16, #tpu.memory_space<vmem>>, vector<256x256xbf16>
    %cst_25 = arith.constant dense<0.000000e+00> : vector<128x256xf32>
    %44 = tpu.matmul %42, %43, %cst_25 {dimension_numbers = #tpu.dot_dimension_numbers<[1], [0], [0], [1], [0, 0, 1, 1], [], []>} : vector<128x256xbf16>, vector<256x256xbf16>, vector<128x256xf32> -> vector<128x256xf32>
    %c0_26 = arith.constant 0 : index
    %c0_27 = arith.constant 0 : index
    %45 = vector.load %arg11[%c0_26, %c0_27] : memref<1x256xf32, #tpu.memory_space<vmem>>, vector<1x256xf32>
    %46 = vector.broadcast %45 : vector<1x256xf32> to vector<128x256xf32>
    %47 = arith.addf %44, %46 : vector<128x256xf32>
    %cst_28 = arith.constant 0.000000e+00 : f32
    %48 = vector.broadcast %cst_28 : f32 to vector<128x256xf32>
    %49 = arith.maximumf %47, %48 : vector<128x256xf32>
    %50 = arith.truncf %49 : vector<128x256xf32> to vector<128x256xbf16>
    %c0_29 = arith.constant 0 : index
    %c0_30 = arith.constant 0 : index
    %51 = vector.load %arg12[%c0_29, %c0_30] : memref<256x128xbf16, #tpu.memory_space<vmem>>, vector<256x128xbf16>
    %cst_31 = arith.constant dense<0.000000e+00> : vector<128x128xf32>
    %52 = tpu.matmul %50, %51, %cst_31 {dimension_numbers = #tpu.dot_dimension_numbers<[1], [0], [0], [1], [0, 0, 1, 1], [], []>} : vector<128x256xbf16>, vector<256x128xbf16>, vector<128x128xf32> -> vector<128x128xf32>
    %c0_32 = arith.constant 0 : index
    %c0_33 = arith.constant 0 : index
    %53 = vector.load %arg13[%c0_32, %c0_33] : memref<1x128xf32, #tpu.memory_space<vmem>>, vector<1x128xf32>
    %54 = vector.broadcast %53 : vector<1x128xf32> to vector<128x128xf32>
    %55 = arith.addf %52, %54 : vector<128x128xf32>
    %c0_34 = arith.constant 0 : index
    %c0_35 = arith.constant 0 : index
    %56 = vector.load %arg14[%c0_34, %c0_35] : memref<128x128xf32, #tpu.memory_space<vmem>>, vector<128x128xf32>
    tpu.vector_store %arg14[%c0_34, %c0_35], %55 {strides = array<i32>} : memref<128x128xf32, #tpu.memory_space<vmem>>, vector<128x128xf32>,
    return
  }
  func.func @transform_0(%arg0: i32) -> (i32, i32) {
    %c0_i32 = arith.constant 0 : i32
    %c0_i32_0 = arith.constant 0 : i32
    return %arg0, %c0_i32 : i32, i32
  }
  func.func @transform_1(%arg0: i32) -> (i32, i32) {
    %c0_i32 = arith.constant 0 : i32
    %c0_i32_0 = arith.constant 0 : i32
    %c0_i32_1 = arith.constant 0 : i32
    return %c0_i32, %c0_i32_0 : i32, i32
  }
  func.func @transform_2(%arg0: i32) -> (i32, i32) {
    %c0_i32 = arith.constant 0 : i32
    %c0_i32_0 = arith.constant 0 : i32
    %c0_i32_1 = arith.constant 0 : i32
    return %c0_i32, %c0_i32_0 : i32, i32
  }
  func.func @transform_3(%arg0: i32) -> (i32, i32) {
    %c0_i32 = arith.constant 0 : i32
    %c0_i32_0 = arith.constant 0 : i32
    %c0_i32_1 = arith.constant 0 : i32
    return %c0_i32, %c0_i32_0 : i32, i32
  }
  func.func @transform_4(%arg0: i32) -> (i32, i32) {
    %c0_i32 = arith.constant 0 : i32
    %c0_i32_0 = arith.constant 0 : i32
    %c0_i32_1 = arith.constant 0 : i32
    return %c0_i32, %c0_i32_0 : i32, i32
  }
  func.func @transform_5(%arg0: i32) -> (i32, i32) {
    %c0_i32 = arith.constant 0 : i32
    %c0_i32_0 = arith.constant 0 : i32
    %c0_i32_1 = arith.constant 0 : i32
    return %c0_i32, %c0_i32_0 : i32, i32
  }
  func.func @transform_6(%arg0: i32) -> (i32, i32) {
    %c0_i32 = arith.constant 0 : i32
    %c0_i32_0 = arith.constant 0 : i32
    %c0_i32_1 = arith.constant 0 : i32
    return %c0_i32, %c0_i32_0 : i32, i32
  }
  func.func @transform_7(%arg0: i32) -> (i32, i32) {
    %c0_i32 = arith.constant 0 : i32
    %c0_i32_0 = arith.constant 0 : i32
    %c0_i32_1 = arith.constant 0 : i32
    return %c0_i32, %c0_i32_0 : i32, i32
  }
  func.func @transform_8(%arg0: i32) -> (i32, i32) {
    %c0_i32 = arith.constant 0 : i32
    %c0_i32_0 = arith.constant 0 : i32
    %c0_i32_1 = arith.constant 0 : i32
    return %c0_i32, %c0_i32_0 : i32, i32
  }
  func.func @transform_9(%arg0: i32) -> (i32, i32) {
    %c0_i32 = arith.constant 0 : i32
    %c0_i32_0 = arith.constant 0 : i32
    %c0_i32_1 = arith.constant 0 : i32
    return %c0_i32, %c0_i32_0 : i32, i32
  }
  func.func @transform_10(%arg0: i32) -> (i32, i32) {
    %c0_i32 = arith.constant 0 : i32
    %c0_i32_0 = arith.constant 0 : i32
    %c0_i32_1 = arith.constant 0 : i32
    return %c0_i32, %c0_i32_0 : i32, i32
  }
  func.func @transform_11(%arg0: i32) -> (i32, i32) {
    %c0_i32 = arith.constant 0 : i32
    %c0_i32_0 = arith.constant 0 : i32
    %c0_i32_1 = arith.constant 0 : i32
    return %c0_i32, %c0_i32_0 : i32, i32
  }
  func.func @transform_12(%arg0: i32) -> (i32, i32) {
    %c0_i32 = arith.constant 0 : i32
    %c0_i32_0 = arith.constant 0 : i32
    %c0_i32_1 = arith.constant 0 : i32
    return %c0_i32, %c0_i32_0 : i32, i32
  }
  func.func @transform_13(%arg0: i32) -> (i32, i32) {
    %c0_i32 = arith.constant 0 : i32
    %c0_i32_0 = arith.constant 0 : i32
    return %arg0, %c0_i32 : i32, i32
  }
}

</mosaic_0001>

<llo_original>
// kernel: tpu_custom_call.1
$region0: #{tpu_custom_call.1}
  #allocation0 [shape = 'u32[]', space=smem, size = 0x4, offset = 0x4, fixed_abs, tag = 'smem constant byte address 0x4 - core index']
  #allocation1 [shape = 'u32[72,128]{1,0:T(1,128)}', space=vmem, size = 0x9000, scoped, tag = 'internal scratch']
  %s0 = inlined_call_operand.vmem [shape: f32[384,2], index: 0, kind: input, shape index: {}]
  %s1 = inlined_call_operand.vmem [shape: f32[2,256], index: 1, kind: input, shape index: {}]
  %s2 = inlined_call_operand.vmem [shape: f32[1,256], index: 2, kind: input, shape index: {}]
  %s3 = inlined_call_operand.vmem [shape: bf16[256,256], index: 3, kind: input, shape index: {}]
  %s4 = inlined_call_operand.vmem [shape: f32[1,256], index: 4, kind: input, shape index: {}]
  %s5 = inlined_call_operand.hbm [shape: bf16[256,256], index: 5, kind: input, shape index: {}]
  %s6 = inlined_call_operand.vmem [shape: f32[1,256], index: 6, kind: input, shape index: {}]
  %s7 = inlined_call_operand.hbm [shape: bf16[256,256], index: 7, kind: input, shape index: {}]
  %s8 = inlined_call_operand.hbm [shape: f32[1,256], index: 8, kind: input, shape index: {}]
  %s9 = inlined_call_operand.hbm [shape: bf16[256,256], index: 9, kind: input, shape index: {}]
  %s10 = inlined_call_operand.vmem [shape: f32[1,256], index: 10, kind: input, shape index: {}]
  %s11 = inlined_call_operand.vmem [shape: bf16[256,128], index: 11, kind: input, shape index: {}]
  %s12 = inlined_call_operand.vmem [shape: f32[1,128], index: 12, kind: input, shape index: {}]
  %s13 = inlined_call_operand.hbm [shape: f32[384,128], index: 13, kind: output, shape index: {}]
  %s14 = sld [smem:[#allocation0]]
  $region101: #{tpu_custom_call.1} parent=0
    _
  %s16 = ssub.s32 1, %s14
  %s17 = scalar_select 0, %s16, %s14
  $region1: #{tpu_custom_call.1} parent=0
    #allocation2 [shape = 'u8[131072]{0}', space=vmem, size = 0x20000, scoped, tag = 'input window, operand 5, single buffered']
    #allocation3 [shape = 's32[2]{0}', space=sflag, size = 0x8, scoped, tag = 'scoped memory for tpu_custom_call.1']
    #allocation4 [shape = 's32[2]{0}', space=sflag, size = 0x8, scoped, tag = 'scoped memory for tpu_custom_call.1']
    #allocation5 [shape = 'u8[131072]{0}', space=vmem, size = 0x20000, scoped, tag = 'input window, operand 7, single buffered']
    #allocation6 [shape = 's32[1]{0}', space=sflag, size = 0x4, scoped, tag = 'scoped memory for tpu_custom_call.1']
    #allocation7 [shape = 'u8[1024]{0}', space=vmem, size = 0x400, scoped, tag = 'input window, operand 8, single buffered']
    #allocation8 [shape = 'u8[131072]{0}', space=vmem, size = 0x20000, scoped, tag = 'input window, operand 9, single buffered']
    #allocation9 [shape = 's32[1]{0}', space=sflag, size = 0x4, scoped, tag = 'scoped memory for tpu_custom_call.1']
    #allocation10 [shape = 'u8[131072]{0}', space=vmem, size = 0x20000, scoped, tag = 'output window, operand 0']
    %18 = vsyncpa [#allocation3], 0
    %19 = vsyncpa [#allocation6], 0
    %20 = vsyncpa [#allocation9], 0
    %21 = vsyncpa [#allocation4], 0
    %s22 = scalar_lea.sflag [#allocation4], 1
    %23 = vsyncpa %s22, 0
    loop: start=0, step=1, limit=5
    $region2: #{tpu_custom_call.1} parent=1 // loop_pre_header
      _
    $region3: #{tpu_custom_call.1} parent=1 // loop_header
      %s25 = sphi 0, %s29
      %p26 = scmp.ge.s32.totalorder %s25, 5
      %s35 = sphi 0, %s37
      %s38 = sphi 0, %s35
      %s39 = sphi 0, %s38
      %s55 = sphi 0, %s39
      %s59 = sphi 0, %s59
      %s61 = sphi 0, %s59
      %s62 = sphi 0, %s61
      %s76 = sphi 0, %s62
      %s80 = sphi 0, %s80
      %s82 = sphi 0, %s80
      %s83 = sphi 0, %s82
      %s97 = sphi 0, %s83
      %s101 = sphi 0, %s101
      %s103 = sphi 0, %s101
      %s104 = sphi 0, %s103
      %s118 = sphi 0, %s104
      %s122 = sphi 0, %s122
      %s124 = sphi 0, %s122
      %s125 = sphi 0, %s124
      %s139 = sphi 0, %s125
      %s143 = sphi 0, %s143
      %s145 = sphi 0, %s143
      %s146 = sphi 0, %s145
      %s160 = sphi 0, %s146
      %s164 = sphi 0, %s164
      %s166 = sphi 0, %s164
      %s167 = sphi 0, %s166
      %s181 = sphi 0, %s167
      %s185 = sphi 0, %s185
      %s187 = sphi 0, %s185
      %s188 = sphi 0, %s187
      %s202 = sphi 0, %s188
      %s206 = sphi 0, %s206
      %s208 = sphi 0, %s206
      %s209 = sphi 0, %s208
      %s223 = sphi 0, %s209
      %s227 = sphi 0, %s227
      %s229 = sphi 0, %s227
      %s230 = sphi 0, %s229
      %s244 = sphi 0, %s230
      %s248 = sphi 0, %s248
      %s250 = sphi 0, %s248
      %s251 = sphi 0, %s250
      %s265 = sphi 0, %s251
      %s269 = sphi 0, %s269
      %s271 = sphi 0, %s269
      %s272 = sphi 0, %s271
      %s286 = sphi 0, %s272
      %s290 = sphi 0, %s290
      %s292 = sphi 0, %s290
      %s293 = sphi 0, %s292
      %s307 = sphi 0, %s293
      %s313 = sphi 0, %s315
      %s316 = sphi 0, %s313
      %s317 = sphi 0, %s316
      %s333 = sphi 0, %s317
    $region4: #{tpu_custom_call.1} parent=1 // loop_header_branch
      %28 = sbr.rel (%p26) target = $region8
    $region5: #{tpu_custom_call.1} parent=1 // loop_body
      %s30 = ssub.s32 %s25, 1
      %s31 = ssub.s32 %s25, 2
      %s32 = sadd.s32 %s25, 1
      %s33 = ssub.s32 %s25, %s32
      %p34 = scmp.eq.s32.totalorder %s33, 0
      %s36 = sadd.s32 %s35, 1
      %s37 = scalar_select %p34, %s35, %s36
      %p40 = pneg %p34
      %p41 = scmp.eq.s32.totalorder %s25, 2
      %p42 = por %p40, %p41
      %p43 = scmp.ne.s32.totalorder %s35, %s38
      %p44 = scmp.eq.s32.totalorder %s25, 0
      %p45 = por %p43, %p44
      %p46 = scmp.ne.s32.totalorder %s35, %s38
      %p47 = scmp.eq.s32.totalorder %s30, 2
      %p48 = por %p46, %p47
      %p49 = scmp.ne.s32.totalorder %s38, %s39
      %p50 = scmp.eq.s32.totalorder %s30, 0
      %p51 = por %p49, %p50
      %p52 = scmp.ne.s32.totalorder %s38, %s39
      %p53 = scmp.eq.s32.totalorder %s31, 2
      %p54 = por %p52, %p53
      %p56 = scmp.ne.s32.totalorder %s39, %s55
      %p57 = scmp.eq.s32.totalorder %s31, 0
      %p58 = por %p56, %p57
      %s60 = sadd.s32 %s59, 1
      %p63 = scmp.eq.s32.totalorder %s25, 2
      %p64 = scmp.ne.s32.totalorder %s59, %s61
      %p65 = scmp.eq.s32.totalorder %s25, 0
      %p66 = por %p64, %p65
      %p67 = scmp.ne.s32.totalorder %s59, %s61
      %p68 = scmp.eq.s32.totalorder %s30, 2
      %p69 = por %p67, %p68
      %p70 = scmp.ne.s32.totalorder %s61, %s62
      %p71 = scmp.eq.s32.totalorder %s30, 0
      %p72 = por %p70, %p71
      %p73 = scmp.ne.s32.totalorder %s61, %s62
      %p74 = scmp.eq.s32.totalorder %s31, 2
      %p75 = por %p73, %p74
      %p77 = scmp.ne.s32.totalorder %s62, %s76
      %p78 = scmp.eq.s32.totalorder %s31, 0
      %p79 = por %p77, %p78
      %s81 = sadd.s32 %s80, 1
      %p84 = scmp.eq.s32.totalorder %s25, 2
      %p85 = scmp.ne.s32.totalorder %s80, %s82
      %p86 = scmp.eq.s32.totalorder %s25, 0
      %p87 = por %p85, %p86
      %p88 = scmp.ne.s32.totalorder %s80, %s82
      %p89 = scmp.eq.s32.totalorder %s30, 2
      %p90 = por %p88, %p89
      %p91 = scmp.ne.s32.totalorder %s82, %s83
      %p92 = scmp.eq.s32.totalorder %s30, 0
      %p93 = por %p91, %p92
      %p94 = scmp.ne.s32.totalorder %s82, %s83
      %p95 = scmp.eq.s32.totalorder %s31, 2
      %p96 = por %p94, %p95
      %p98 = scmp.ne.s32.totalorder %s83, %s97
      %p99 = scmp.eq.s32.totalorder %s31, 0
      %p100 = por %p98, %p99
      %s102 = sadd.s32 %s101, 1
      %p105 = scmp.eq.s32.totalorder %s25, 2
      %p106 = scmp.ne.s32.totalorder %s101, %s103
      %p107 = scmp.eq.s32.totalorder %s25, 0
      %p108 = por %p106, %p107
      %p109 = scmp.ne.s32.totalorder %s101, %s103
      %p110 = scmp.eq.s32.totalorder %s30, 2
      %p111 = por %p109, %p110
      %p112 = scmp.ne.s32.totalorder %s103, %s104
      %p113 = scmp.eq.s32.totalorder %s30, 0
      %p114 = por %p112, %p113
      %p115 = scmp.ne.s32.totalorder %s103, %s104
      %p116 = scmp.eq.s32.totalorder %s31, 2
      %p117 = por %p115, %p116
      %p119 = scmp.ne.s32.totalorder %s104, %s118
      %p120 = scmp.eq.s32.totalorder %s31, 0
      %p121 = por %p119, %p120
      %s123 = sadd.s32 %s122, 1
      %p126 = scmp.eq.s32.totalorder %s25, 2
      %p127 = scmp.ne.s32.totalorder %s122, %s124
      %p128 = scmp.eq.s32.totalorder %s25, 0
      %p129 = por %p127, %p128
      %p130 = scmp.ne.s32.totalorder %s122, %s124
      %p131 = scmp.eq.s32.totalorder %s30, 2
      %p132 = por %p130, %p131
      %p133 = scmp.ne.s32.totalorder %s124, %s125
      %p134 = scmp.eq.s32.totalorder %s30, 0
      %p135 = por %p133, %p134
      %p136 = scmp.ne.s32.totalorder %s124, %s125
      %p137 = scmp.eq.s32.totalorder %s31, 2
      %p138 = por %p136, %p137
      %p140 = scmp.ne.s32.totalorder %s125, %s139
      %p141 = scmp.eq.s32.totalorder %s31, 0
      %p142 = por %p140, %p141
      %s144 = sadd.s32 %s143, 1
      %p147 = scmp.eq.s32.totalorder %s25, 2
      %p148 = scmp.ne.s32.totalorder %s143, %s145
      %p149 = scmp.eq.s32.totalorder %s25, 0
      %p150 = por %p148, %p149
      %p151 = scmp.ne.s32.totalorder %s143, %s145
      %p152 = scmp.eq.s32.totalorder %s30, 2
      %p153 = por %p151, %p152
      %p154 = scmp.ne.s32.totalorder %s145, %s146
      %p155 = scmp.eq.s32.totalorder %s30, 0
      %p156 = por %p154, %p155
      %p157 = scmp.ne.s32.totalorder %s145, %s146
      %p158 = scmp.eq.s32.totalorder %s31, 2
      %p159 = por %p157, %p158
      %p161 = scmp.ne.s32.totalorder %s146, %s160
      %p162 = scmp.eq.s32.totalorder %s31, 0
      %p163 = por %p161, %p162
      %s165 = sadd.s32 %s164, 1
      %p168 = scmp.eq.s32.totalorder %s25, 2
      %p169 = scmp.ne.s32.totalorder %s164, %s166
      %p170 = scmp.eq.s32.totalorder %s25, 0
      %p171 = por %p169, %p170
      %p172 = scmp.ne.s32.totalorder %s164, %s166
      %p173 = scmp.eq.s32.totalorder %s30, 2
      %p174 = por %p172, %p173
      %p175 = scmp.ne.s32.totalorder %s166, %s167
      %p176 = scmp.eq.s32.totalorder %s30, 0
      %p177 = por %p175, %p176
      %p178 = scmp.ne.s32.totalorder %s166, %s167
      %p179 = scmp.eq.s32.totalorder %s31, 2
      %p180 = por %p178, %p179
      %p182 = scmp.ne.s32.totalorder %s167, %s181
      %p183 = scmp.eq.s32.totalorder %s31, 0
      %p184 = por %p182, %p183
      %s186 = sadd.s32 %s185, 1
      %p189 = scmp.eq.s32.totalorder %s25, 2
      %p190 = scmp.ne.s32.totalorder %s185, %s187
      %p191 = scmp.eq.s32.totalorder %s25, 0
      %p192 = por %p190, %p191
      %p193 = scmp.ne.s32.totalorder %s185, %s187
      %p194 = scmp.eq.s32.totalorder %s30, 2
      %p195 = por %p193, %p194
      %p196 = scmp.ne.s32.totalorder %s187, %s188
      %p197 = scmp.eq.s32.totalorder %s30, 0
      %p198 = por %p196, %p197
      %p199 = scmp.ne.s32.totalorder %s187, %s188
      %p200 = scmp.eq.s32.totalorder %s31, 2
      %p201 = por %p199, %p200
      %p203 = scmp.ne.s32.totalorder %s188, %s202
      %p204 = scmp.eq.s32.totalorder %s31, 0
      %p205 = por %p203, %p204
      %s207 = sadd.s32 %s206, 1
      %p210 = scmp.eq.s32.totalorder %s25, 2
      %p211 = scmp.ne.s32.totalorder %s206, %s208
      %p212 = scmp.eq.s32.totalorder %s25, 0
      %p213 = por %p211, %p212
      %p214 = scmp.ne.s32.totalorder %s206, %s208
      %p215 = scmp.eq.s32.totalorder %s30, 2
      %p216 = por %p214, %p215
      %p217 = scmp.ne.s32.totalorder %s208, %s209
      %p218 = scmp.eq.s32.totalorder %s30, 0
      %p219 = por %p217, %p218
      %p220 = scmp.ne.s32.totalorder %s208, %s209
      %p221 = scmp.eq.s32.totalorder %s31, 2
      %p222 = por %p220, %p221
      %p224 = scmp.ne.s32.totalorder %s209, %s223
      %p225 = scmp.eq.s32.totalorder %s31, 0
      %p226 = por %p224, %p225
      %s228 = sadd.s32 %s227, 1
      %p231 = scmp.eq.s32.totalorder %s25, 2
      %p232 = scmp.ne.s32.totalorder %s227, %s229
      %p233 = scmp.eq.s32.totalorder %s25, 0
      %p234 = por %p232, %p233
      %p235 = scmp.ne.s32.totalorder %s227, %s229
      %p236 = scmp.eq.s32.totalorder %s30, 2
      %p237 = por %p235, %p236
      %p238 = scmp.ne.s32.totalorder %s229, %s230
      %p239 = scmp.eq.s32.totalorder %s30, 0
      %p240 = por %p238, %p239
      %p241 = scmp.ne.s32.totalorder %s229, %s230
      %p242 = scmp.eq.s32.totalorder %s31, 2
      %p243 = por %p241, %p242
      %p245 = scmp.ne.s32.totalorder %s230, %s244
      %p246 = scmp.eq.s32.totalorder %s31, 0
      %p247 = por %p245, %p246
      %s249 = sadd.s32 %s248, 1
      %p252 = scmp.eq.s32.totalorder %s25, 2
      %p253 = scmp.ne.s32.totalorder %s248, %s250
      %p254 = scmp.eq.s32.totalorder %s25, 0
      %p255 = por %p253, %p254
      %p256 = scmp.ne.s32.totalorder %s248, %s250
      %p257 = scmp.eq.s32.totalorder %s30, 2
      %p258 = por %p256, %p257
      %p259 = scmp.ne.s32.totalorder %s250, %s251
      %p260 = scmp.eq.s32.totalorder %s30, 0
      %p261 = por %p259, %p260
      %p262 = scmp.ne.s32.totalorder %s250, %s251
      %p263 = scmp.eq.s32.totalorder %s31, 2
      %p264 = por %p262, %p263
      %p266 = scmp.ne.s32.totalorder %s251, %s265
      %p267 = scmp.eq.s32.totalorder %s31, 0
      %p268 = por %p266, %p267
      %s270 = sadd.s32 %s269, 1
      %p273 = scmp.eq.s32.totalorder %s25, 2
      %p274 = scmp.ne.s32.totalorder %s269, %s271
      %p275 = scmp.eq.s32.totalorder %s25, 0
      %p276 = por %p274, %p275
      %p277 = scmp.ne.s32.totalorder %s269, %s271
      %p278 = scmp.eq.s32.totalorder %s30, 2
      %p279 = por %p277, %p278
      %p280 = scmp.ne.s32.totalorder %s271, %s272
      %p281 = scmp.eq.s32.totalorder %s30, 0
      %p282 = por %p280, %p281
      %p283 = scmp.ne.s32.totalorder %s271, %s272
      %p284 = scmp.eq.s32.totalorder %s31, 2
      %p285 = por %p283, %p284
      %p287 = scmp.ne.s32.totalorder %s272, %s286
      %p288 = scmp.eq.s32.totalorder %s31, 0
      %p289 = por %p287, %p288
      %s291 = sadd.s32 %s290, 1
      %p294 = scmp.eq.s32.totalorder %s25, 2
      %p295 = scmp.ne.s32.totalorder %s290, %s292
      %p296 = scmp.eq.s32.totalorder %s25, 0
      %p297 = por %p295, %p296
      %p298 = scmp.ne.s32.totalorder %s290, %s292
      %p299 = scmp.eq.s32.totalorder %s30, 2
      %p300 = por %p298, %p299
      %p301 = scmp.ne.s32.totalorder %s292, %s293
      %p302 = scmp.eq.s32.totalorder %s30, 0
      %p303 = por %p301, %p302
      %p304 = scmp.ne.s32.totalorder %s292, %s293
      %p305 = scmp.eq.s32.totalorder %s31, 2
      %p306 = por %p304, %p305
      %p308 = scmp.ne.s32.totalorder %s293, %s307
      %p309 = scmp.eq.s32.totalorder %s31, 0
      %p310 = por %p308, %p309
      %s311 = ssub.s32 %s25, %s32
      %p312 = scmp.eq.s32.totalorder %s311, 0
      %s314 = sadd.s32 %s313, 1
      %s315 = scalar_select %p312, %s313, %s314
      %p318 = pneg %p312
      %p319 = scmp.eq.s32.totalorder %s25, 2
      %p320 = por %p318, %p319
      %p321 = scmp.ne.s32.totalorder %s313, %s316
      %p322 = scmp.eq.s32.totalorder %s25, 0
      %p323 = por %p321, %p322
      %p324 = scmp.ne.s32.totalorder %s313, %s316
      %p325 = scmp.eq.s32.totalorder %s30, 2
      %p326 = por %p324, %p325
      %p327 = scmp.ne.s32.totalorder %s316, %s317
      %p328 = scmp.eq.s32.totalorder %s30, 0
      %p329 = por %p327, %p328
      %p330 = scmp.ne.s32.totalorder %s316, %s317
      %p331 = scmp.eq.s32.totalorder %s31, 2
      %p332 = por %p330, %p331
      %p334 = scmp.ne.s32.totalorder %s317, %s333
      %p335 = scmp.eq.s32.totalorder %s31, 0
      %p336 = por %p334, %p335
      %p337 = scmp.le.s32.totalorder 1, %s25
      %p338 = scmp.lt.s32.totalorder %s25, 4
      %p339 = pnand %p337, %p338
      %p340 = pneg %p339
      // Predicated region
      $region9: #{tpu_custom_call.1} parent=5 // pred_check
        _
      $region10: #{tpu_custom_call.1} parent=5 // pred_check_branch
        %342 = sbr.rel (%p339) target = $region12
      $region11: #{tpu_custom_call.1} parent=5 // pred_region
        %s343 = ssub.s32 %s25, 1
        // Predicated region
        $region13: #{tpu_custom_call.1} parent=11 // pred_check
          %p344 = pneg %p72
        $region14: #{tpu_custom_call.1} parent=11 // pred_check_branch
          %346 = sbr.rel (%p344) target = $region16
        $region15: #{tpu_custom_call.1} parent=11 // pred_region
          _
        $region16: #{tpu_custom_call.1} parent=11 // pred_fallthru
          _
        // Predicated region
        $region17: #{tpu_custom_call.1} parent=11 // pred_check
          %p347 = pneg %p93
        $region18: #{tpu_custom_call.1} parent=11 // pred_check_branch
          %349 = sbr.rel (%p347) target = $region20
        $region19: #{tpu_custom_call.1} parent=11 // pred_region
          _
        $region20: #{tpu_custom_call.1} parent=11 // pred_fallthru
          _
        // Predicated region
        $region21: #{tpu_custom_call.1} parent=11 // pred_check
          %p350 = pneg %p114
        $region22: #{tpu_custom_call.1} parent=11 // pred_check_branch
          %352 = sbr.rel (%p350) target = $region24
        $region23: #{tpu_custom_call.1} parent=11 // pred_region
          _
        $region24: #{tpu_custom_call.1} parent=11 // pred_fallthru
          _
        // Predicated region
        $region25: #{tpu_custom_call.1} parent=11 // pred_check
          %p353 = pneg %p135
        $region26: #{tpu_custom_call.1} parent=11 // pred_check_branch
          %355 = sbr.rel (%p353) target = $region28
        $region27: #{tpu_custom_call.1} parent=11 // pred_region
          _
        $region28: #{tpu_custom_call.1} parent=11 // pred_fallthru
          _
        // Predicated region
        $region29: #{tpu_custom_call.1} parent=11 // pred_check
          %p356 = pneg %p156
        $region30: #{tpu_custom_call.1} parent=11 // pred_check_branch
          %358 = sbr.rel (%p356) target = $region32
        $region31: #{tpu_custom_call.1} parent=11 // pred_region
          %360 = vsyncadd [#allocation3], 0
          %s361 = sshll.u32 %s5, 4
          %s362 = int_to_ptr.hbm [resolvable:$true] %s361
          %s363 = sshll.u32 [#allocation2], 4
          %s364 = int_to_ptr.vmem [resolvable:$true] %s363
          %369 = dma.hbm_to_vmem [thread:$0]  %s362, 4096, %s364, [#allocation3], 128, 128, 8
        $region32: #{tpu_custom_call.1} parent=11 // pred_fallthru
          _
        // Predicated region
        $region33: #{tpu_custom_call.1} parent=11 // pred_check
          %p370 = pneg %p177
        $region34: #{tpu_custom_call.1} parent=11 // pred_check_branch
          %372 = sbr.rel (%p370) target = $region36
        $region35: #{tpu_custom_call.1} parent=11 // pred_region
          _
        $region36: #{tpu_custom_call.1} parent=11 // pred_fallthru
          _
        // Predicated region
        $region37: #{tpu_custom_call.1} parent=11 // pred_check
          %p373 = pneg %p198
        $region38: #{tpu_custom_call.1} parent=11 // pred_check_branch
          %375 = sbr.rel (%p373) target = $region40
        $region39: #{tpu_custom_call.1} parent=11 // pred_region
          %377 = vsyncadd [#allocation6], 0
          %s378 = sshll.u32 %s7, 4
          %s379 = int_to_ptr.hbm [resolvable:$true] %s378
          %s380 = sshll.u32 [#allocation5], 4
          %s381 = int_to_ptr.vmem [resolvable:$true] %s380
          %386 = dma.hbm_to_vmem [thread:$0]  %s379, 4096, %s381, [#allocation6], 128, 128, 8
        $region40: #{tpu_custom_call.1} parent=11 // pred_fallthru
          _
        // Predicated region
        $region41: #{tpu_custom_call.1} parent=11 // pred_check
          %p387 = pneg %p219
        $region42: #{tpu_custom_call.1} parent=11 // pred_check_branch
          %389 = sbr.rel (%p387) target = $region44
        $region43: #{tpu_custom_call.1} parent=11 // pred_region
          %391 = vsyncadd [#allocation6], 0
          %s393 = sshll.u32 %s8, 4
          %s394 = int_to_ptr.hbm [resolvable:$true] %s393
          %s395 = sshll.u32 [#allocation7], 4
          %s396 = int_to_ptr.vmem [resolvable:$true] %s395
          %398 = dma.hbm_to_vmem [thread:$0]  %s394, 32, %s396, [#allocation6]
        $region44: #{tpu_custom_call.1} parent=11 // pred_fallthru
          _
        // Predicated region
        $region45: #{tpu_custom_call.1} parent=11 // pred_check
          %p399 = pneg %p240
        $region46: #{tpu_custom_call.1} parent=11 // pred_check_branch
          %401 = sbr.rel (%p399) target = $region48
        $region47: #{tpu_custom_call.1} parent=11 // pred_region
          %403 = vsyncadd [#allocation9], 0
          %s404 = sshll.u32 %s9, 4
          %s405 = int_to_ptr.hbm [resolvable:$true] %s404
          %s406 = sshll.u32 [#allocation8], 4
          %s407 = int_to_ptr.vmem [resolvable:$true] %s406
          %412 = dma.hbm_to_vmem [thread:$0]  %s405, 4096, %s407, [#allocation9], 128, 128, 8
        $region48: #{tpu_custom_call.1} parent=11 // pred_fallthru
          _
        // Predicated region
        $region49: #{tpu_custom_call.1} parent=11 // pred_check
          %p413 = pneg %p261
        $region50: #{tpu_custom_call.1} parent=11 // pred_check_branch
          %415 = sbr.rel (%p413) target = $region52
        $region51: #{tpu_custom_call.1} parent=11 // pred_region
          _
        $region52: #{tpu_custom_call.1} parent=11 // pred_fallthru
          _
        // Predicated region
        $region53: #{tpu_custom_call.1} parent=11 // pred_check
          %p416 = pneg %p282
        $region54: #{tpu_custom_call.1} parent=11 // pred_check_branch
          %418 = sbr.rel (%p416) target = $region56
        $region55: #{tpu_custom_call.1} parent=11 // pred_region
          _
        $region56: #{tpu_custom_call.1} parent=11 // pred_fallthru
          _
        // Predicated region
        $region57: #{tpu_custom_call.1} parent=11 // pred_check
          %p419 = pneg %p303
        $region58: #{tpu_custom_call.1} parent=11 // pred_check_branch
          %421 = sbr.rel (%p419) target = $region60
        $region59: #{tpu_custom_call.1} parent=11 // pred_region
          _
        $region60: #{tpu_custom_call.1} parent=11 // pred_fallthru
          _
      $region12: #{tpu_custom_call.1} parent=5 // pred_fallthru
        _
      %p422 = scmp.lt.s32.totalorder %s25, 3
      // Predicated region
      $region61: #{tpu_custom_call.1} parent=5 // pred_check
        %p423 = pneg %p422
      $region62: #{tpu_custom_call.1} parent=5 // pred_check_branch
        %425 = sbr.rel (%p423) target = $region64
      $region63: #{tpu_custom_call.1} parent=5 // pred_region
        // Predicated region
        $region65: #{tpu_custom_call.1} parent=63 // pred_check
          %p426 = pneg %p45
        $region66: #{tpu_custom_call.1} parent=63 // pred_check_branch
          %428 = sbr.rel (%p426) target = $region68
        $region67: #{tpu_custom_call.1} parent=63 // pred_region
          %s429 = smul.u32 16, %s25
          %p430 = scmp.lt.s32.totalorder %s429, 47
          %s431 = scalar_select %p430, %s429, 47
          %s432 = smul.addr %s431, 8
          %s433 = scalar_lea.vmem %s0, %s432
          %s434 = smul.u32 16, %s25
        $region68: #{tpu_custom_call.1} parent=63 // pred_fallthru
          _
      $region64: #{tpu_custom_call.1} parent=5 // pred_fallthru
        _
      %p435 = scmp.le.s32.totalorder 1, %s25
      %p436 = scmp.lt.s32.totalorder %s25, 4
      %p437 = pnand %p435, %p436
      %p438 = pneg %p437
      // Predicated region
      $region69: #{tpu_custom_call.1} parent=5 // pred_check
        _
      $region70: #{tpu_custom_call.1} parent=5 // pred_check_branch
        %440 = sbr.rel (%p437) target = $region72
      $region71: #{tpu_custom_call.1} parent=5 // pred_region
        %s441 = ssub.s32 %s25, 1
        // Predicated region
        $region73: #{tpu_custom_call.1} parent=71 // pred_check
          %p442 = pneg %p156
        $region74: #{tpu_custom_call.1} parent=71 // pred_check_branch
          %444 = sbr.rel (%p442) target = $region76
        $region75: #{tpu_custom_call.1} parent=71 // pred_region
          %446 = dma.done [#allocation3], 4096
        $region76: #{tpu_custom_call.1} parent=71 // pred_fallthru
          _
        // Predicated region
        $region77: #{tpu_custom_call.1} parent=71 // pred_check
          %p447 = pneg %p198
        $region78: #{tpu_custom_call.1} parent=71 // pred_check_branch
          %449 = sbr.rel (%p447) target = $region80
        $region79: #{tpu_custom_call.1} parent=71 // pred_region
          %451 = dma.done [#allocation6], 4096
        $region80: #{tpu_custom_call.1} parent=71 // pred_fallthru
          _
        // Predicated region
        $region81: #{tpu_custom_call.1} parent=71 // pred_check
          %p452 = pneg %p219
        $region82: #{tpu_custom_call.1} parent=71 // pred_check_branch
          %454 = sbr.rel (%p452) target = $region84
        $region83: #{tpu_custom_call.1} parent=71 // pred_region
          %456 = dma.done [#allocation6], 32
        $region84: #{tpu_custom_call.1} parent=71 // pred_fallthru
          _
        // Predicated region
        $region85: #{tpu_custom_call.1} parent=71 // pred_check
          %p457 = pneg %p240
        $region86: #{tpu_custom_call.1} parent=71 // pred_check_branch
          %459 = sbr.rel (%p457) target = $region88
        $region87: #{tpu_custom_call.1} parent=71 // pred_region
          %461 = dma.done [#allocation9], 4096
        $region88: #{tpu_custom_call.1} parent=71 // pred_fallthru
          _
        %s462 = smul.u32 16, %s30
        %p463 = scmp.lt.s32.totalorder %s462, 47
        %s464 = scalar_select %p463, %s462, 47
        %s465 = smul.addr %s464, 8
        %s466 = scalar_lea.vmem %s0, %s465
        %p467 = pneg %p51
        %p468 = pneg %p48
        %p469 = pneg %p72
        %p470 = pneg %p69
        %p471 = pneg %p93
        %p472 = pneg %p90
        %p473 = pneg %p114
        %p474 = pneg %p111
        %p475 = pneg %p135
        %p476 = pneg %p132
        %p477 = pneg %p156
        %p478 = pneg %p153
        %p479 = pneg %p177
        %p480 = pneg %p174
        %p481 = pneg %p198
        %p482 = pneg %p195
        %p483 = pneg %p219
        %p484 = pneg %p216
        %p485 = pneg %p240
        %p486 = pneg %p237
        %p487 = pneg %p261
        %p488 = pneg %p258
        %p489 = pneg %p282
        %p490 = pneg %p279
        %p491 = pneg %p303
        %p492 = pneg %p300
        %p493 = pneg %p329
        %p494 = pneg %p326
        %s495 = sand.u32 %s316, 1
        %s496 = scalar_lea.sflag [#allocation4], %s495
        %s497 = sand.u32 %s316, 1
        %s498 = smul.addr %s497, 128
        %s499 = scalar_lea.vmem [#allocation10], %s498
        %s500 = smul.u32 16, %s30
        %p501 = scmp.lt.s32.totalorder %s500, 47
        %s502 = scalar_select %p501, %s500, 47
        %s503 = smul.addr %s502, 8
        %s504 = scalar_lea.vmem %s0, %s503
        %s505 = smul.u32 16, %s30
        %s506 = smul.u32 16, %s30
        %v507 = vld [vmem:[%s504] sm:$0xff]
        %v508 = vld [vmem:[%s504 + $0x8] sm:$0xff]
        %v509 = vld [vmem:[%s504 + $0x10] sm:$0xff]
        %v510 = vld [vmem:[%s504 + $0x18] sm:$0xff]
        %v511 = vld [vmem:[%s504 + $0x20] sm:$0xff]
        %v512 = vld [vmem:[%s504 + $0x28] sm:$0xff]
        %v513 = vld [vmem:[%s504 + $0x30] sm:$0xff]
        %v514 = vld [vmem:[%s504 + $0x38] sm:$0xff]
        %v515 = vld [vmem:[%s504 + $0x40] sm:$0xff]
        %v516 = vld [vmem:[%s504 + $0x48] sm:$0xff]
        %v517 = vld [vmem:[%s504 + $0x50] sm:$0xff]
        %v518 = vld [vmem:[%s504 + $0x58] sm:$0xff]
        %v519 = vld [vmem:[%s504 + $0x60] sm:$0xff]
        %v520 = vld [vmem:[%s504 + $0x68] sm:$0xff]
        %v521 = vld [vmem:[%s504 + $0x70] sm:$0xff]
        %v522 = vld [vmem:[%s504 + $0x78] sm:$0xff]
        %v523 = vld [vmem:[%s1] sm:$0xf]
        %525 = vset.pattern.permute.xlu0 0
        %526 = vperm.xlu0 %525, %v507
        %v527 = vpop.permute.xlu0 %526
        %530 = vset.pattern.permute.xlu0 0
        %531 = vperm.xlu0 %530, %v508
        %v532 = vpop.permute.xlu0 %531
        %535 = vset.pattern.permute.xlu0 0
        %536 = vperm.xlu0 %535, %v509
        %v537 = vpop.permute.xlu0 %536
        %540 = vset.pattern.permute.xlu0 0
        %541 = vperm.xlu0 %540, %v510
        %v542 = vpop.permute.xlu0 %541
        %545 = vset.pattern.permute.xlu0 0
        %546 = vperm.xlu0 %545, %v511
        %v547 = vpop.permute.xlu0 %546
        %550 = vset.pattern.permute.xlu0 0
        %551 = vperm.xlu0 %550, %v512
        %v552 = vpop.permute.xlu0 %551
        %555 = vset.pattern.permute.xlu0 0
        %556 = vperm.xlu0 %555, %v513
        %v557 = vpop.permute.xlu0 %556
        %560 = vset.pattern.permute.xlu0 0
        %561 = vperm.xlu0 %560, %v514
        %v562 = vpop.permute.xlu0 %561
        %565 = vset.pattern.permute.xlu0 0
        %566 = vperm.xlu0 %565, %v515
        %v567 = vpop.permute.xlu0 %566
        %570 = vset.pattern.permute.xlu0 0
        %571 = vperm.xlu0 %570, %v516
        %v572 = vpop.permute.xlu0 %571
        %575 = vset.pattern.permute.xlu0 0
        %576 = vperm.xlu0 %575, %v517
        %v577 = vpop.permute.xlu0 %576
        %580 = vset.pattern.permute.xlu0 0
        %581 = vperm.xlu0 %580, %v518
        %v582 = vpop.permute.xlu0 %581
        %585 = vset.pattern.permute.xlu0 0
        %586 = vperm.xlu0 %585, %v519
        %v587 = vpop.permute.xlu0 %586
        %590 = vset.pattern.permute.xlu0 0
        %591 = vperm.xlu0 %590, %v520
        %v592 = vpop.permute.xlu0 %591
        %595 = vset.pattern.permute.xlu0 0
        %596 = vperm.xlu0 %595, %v521
        %v597 = vpop.permute.xlu0 %596
        %600 = vset.pattern.permute.xlu0 0
        %601 = vperm.xlu0 %600, %v522
        %v602 = vpop.permute.xlu0 %601
        %v605 = vperm.slane %v523, 0
        %v606 = vperm.slane %v523, 2
        %v609 = vperm.slane %v605, 0
        %v610 = vperm.slane %v606, 0
        %v611 = vmul.f32 %v527, %v609
        %v612 = vmul.f32 %v527, %v610
        %v613 = vmul.f32 %v532, %v609
        %v614 = vmul.f32 %v532, %v610
        %v615 = vmul.f32 %v537, %v609
        %v616 = vmul.f32 %v537, %v610
        %v617 = vmul.f32 %v542, %v609
        %v618 = vmul.f32 %v542, %v610
        %v619 = vmul.f32 %v547, %v609
        %v620 = vmul.f32 %v547, %v610
        %v621 = vmul.f32 %v552, %v609
        %v622 = vmul.f32 %v552, %v610
        %v623 = vmul.f32 %v557, %v609
        %v624 = vmul.f32 %v557, %v610
        %v625 = vmul.f32 %v562, %v609
        %v626 = vmul.f32 %v562, %v610
        %v627 = vmul.f32 %v567, %v609
        %v628 = vmul.f32 %v567, %v610
        %v629 = vmul.f32 %v572, %v609
        %v630 = vmul.f32 %v572, %v610
        %v631 = vmul.f32 %v577, %v609
        %v632 = vmul.f32 %v577, %v610
        %v633 = vmul.f32 %v582, %v609
        %v634 = vmul.f32 %v582, %v610
        %v635 = vmul.f32 %v587, %v609
        %v636 = vmul.f32 %v587, %v610
        %v637 = vmul.f32 %v592, %v609
        %v638 = vmul.f32 %v592, %v610
        %v639 = vmul.f32 %v597, %v609
        %v640 = vmul.f32 %v597, %v610
        %v641 = vmul.f32 %v602, %v609
        %v642 = vmul.f32 %v602, %v610
        %643 = vset.pattern.permute.xlu0 1
        %644 = vperm.xlu0 %643, %v507
        %v645 = vpop.permute.xlu0 %644
        %647 = vset.pattern.permute.xlu0 1
        %648 = vperm.xlu0 %647, %v508
        %v649 = vpop.permute.xlu0 %648
        %651 = vset.pattern.permute.xlu0 1
        %652 = vperm.xlu0 %651, %v509
        %v653 = vpop.permute.xlu0 %652
        %655 = vset.pattern.permute.xlu0 1
        %656 = vperm.xlu0 %655, %v510
        %v657 = vpop.permute.xlu0 %656
        %659 = vset.pattern.permute.xlu0 1
        %660 = vperm.xlu0 %659, %v511
        %v661 = vpop.permute.xlu0 %660
        %663 = vset.pattern.permute.xlu0 1
        %664 = vperm.xlu0 %663, %v512
        %v665 = vpop.permute.xlu0 %664
        %667 = vset.pattern.permute.xlu0 1
        %668 = vperm.xlu0 %667, %v513
        %v669 = vpop.permute.xlu0 %668
        %671 = vset.pattern.permute.xlu0 1
        %672 = vperm.xlu0 %671, %v514
        %v673 = vpop.permute.xlu0 %672
        %675 = vset.pattern.permute.xlu0 1
        %676 = vperm.xlu0 %675, %v515
        %v677 = vpop.permute.xlu0 %676
        %679 = vset.pattern.permute.xlu0 1
        %680 = vperm.xlu0 %679, %v516
        %v681 = vpop.permute.xlu0 %680
        %683 = vset.pattern.permute.xlu0 1
        %684 = vperm.xlu0 %683, %v517
        %v685 = vpop.permute.xlu0 %684
        %687 = vset.pattern.permute.xlu0 1
        %688 = vperm.xlu0 %687, %v518
        %v689 = vpop.permute.xlu0 %688
        %691 = vset.pattern.permute.xlu0 1
        %692 = vperm.xlu0 %691, %v519
        %v693 = vpop.permute.xlu0 %692
        %695 = vset.pattern.permute.xlu0 1
        %696 = vperm.xlu0 %695, %v520
        %v697 = vpop.permute.xlu0 %696
        %699 = vset.pattern.permute.xlu0 1
        %700 = vperm.xlu0 %699, %v521
        %v701 = vpop.permute.xlu0 %700
        %703 = vset.pattern.permute.xlu0 1
        %704 = vperm.xlu0 %703, %v522
        %v705 = vpop.permute.xlu0 %704
        %v707 = vperm.slane %v523, 1
        %v708 = vperm.slane %v523, 3
        %v711 = vperm.slane %v707, 1
        %v712 = vperm.slane %v708, 1
        %v713 = vmul.f32 %v645, %v711
        %v714 = vmul.f32 %v645, %v712
        %v715 = vmul.f32 %v649, %v711
        %v716 = vmul.f32 %v649, %v712
        %v717 = vmul.f32 %v653, %v711
        %v718 = vmul.f32 %v653, %v712
        %v719 = vmul.f32 %v657, %v711
        %v720 = vmul.f32 %v657, %v712
        %v721 = vmul.f32 %v661, %v711
        %v722 = vmul.f32 %v661, %v712
        %v723 = vmul.f32 %v665, %v711
        %v724 = vmul.f32 %v665, %v712
        %v725 = vmul.f32 %v669, %v711
        %v726 = vmul.f32 %v669, %v712
        %v727 = vmul.f32 %v673, %v711
        %v728 = vmul.f32 %v673, %v712
        %v729 = vmul.f32 %v677, %v711
        %v730 = vmul.f32 %v677, %v712
        %v731 = vmul.f32 %v681, %v711
        %v732 = vmul.f32 %v681, %v712
        %v733 = vmul.f32 %v685, %v711
        %v734 = vmul.f32 %v685, %v712
        %v735 = vmul.f32 %v689, %v711
        %v736 = vmul.f32 %v689, %v712
        %v737 = vmul.f32 %v693, %v711
        %v738 = vmul.f32 %v693, %v712
        %v739 = vmul.f32 %v697, %v711
        %v740 = vmul.f32 %v697, %v712
        %v741 = vmul.f32 %v701, %v711
        %v742 = vmul.f32 %v701, %v712
        %v743 = vmul.f32 %v705, %v711
        %v744 = vmul.f32 %v705, %v712
        %v745 = vadd.f32 %v611, %v713
        %v746 = vadd.f32 %v612, %v714
        %v747 = vadd.f32 %v613, %v715
        %v748 = vadd.f32 %v614, %v716
        %v749 = vadd.f32 %v615, %v717
        %v750 = vadd.f32 %v616, %v718
        %v751 = vadd.f32 %v617, %v719
        %v752 = vadd.f32 %v618, %v720
        %v753 = vadd.f32 %v619, %v721
        %v754 = vadd.f32 %v620, %v722
        %v755 = vadd.f32 %v621, %v723
        %v756 = vadd.f32 %v622, %v724
        %v757 = vadd.f32 %v623, %v725
        %v758 = vadd.f32 %v624, %v726
        %v759 = vadd.f32 %v625, %v727
        %v760 = vadd.f32 %v626, %v728
        %v761 = vadd.f32 %v627, %v729
        %v762 = vadd.f32 %v628, %v730
        %v763 = vadd.f32 %v629, %v731
        %v764 = vadd.f32 %v630, %v732
        %v765 = vadd.f32 %v631, %v733
        %v766 = vadd.f32 %v632, %v734
        %v767 = vadd.f32 %v633, %v735
        %v768 = vadd.f32 %v634, %v736
        %v769 = vadd.f32 %v635, %v737
        %v770 = vadd.f32 %v636, %v738
        %v771 = vadd.f32 %v637, %v739
        %v772 = vadd.f32 %v638, %v740
        %v773 = vadd.f32 %v639, %v741
        %v774 = vadd.f32 %v640, %v742
        %v775 = vadd.f32 %v641, %v743
        %v776 = vadd.f32 %v642, %v744
        %v777 = vld [vmem:[%s2] sm:$0x3]
        %v779 = vperm.slane %v777, 0
        %v780 = vperm.slane %v777, 1
        %v783 = vadd.f32 %v745, %v779
        %v784 = vadd.f32 %v746, %v780
        %v785 = vadd.f32 %v747, %v779
        %v786 = vadd.f32 %v748, %v780
        %v787 = vadd.f32 %v749, %v779
        %v788 = vadd.f32 %v750, %v780
        %v789 = vadd.f32 %v751, %v779
        %v790 = vadd.f32 %v752, %v780
        %v791 = vadd.f32 %v753, %v779
        %v792 = vadd.f32 %v754, %v780
        %v793 = vadd.f32 %v755, %v779
        %v794 = vadd.f32 %v756, %v780
        %v795 = vadd.f32 %v757, %v779
        %v796 = vadd.f32 %v758, %v780
        %v797 = vadd.f32 %v759, %v779
        %v798 = vadd.f32 %v760, %v780
        %v799 = vadd.f32 %v761, %v779
        %v800 = vadd.f32 %v762, %v780
        %v801 = vadd.f32 %v763, %v779
        %v802 = vadd.f32 %v764, %v780
        %v803 = vadd.f32 %v765, %v779
        %v804 = vadd.f32 %v766, %v780
        %v805 = vadd.f32 %v767, %v779
        %v806 = vadd.f32 %v768, %v780
        %v807 = vadd.f32 %v769, %v779
        %v808 = vadd.f32 %v770, %v780
        %v809 = vadd.f32 %v771, %v779
        %v810 = vadd.f32 %v772, %v780
        %v811 = vadd.f32 %v773, %v779
        %v812 = vadd.f32 %v774, %v780
        %v813 = vadd.f32 %v775, %v779
        %v814 = vadd.f32 %v776, %v780
        %v815 = vmax.f32 %v783, 0.0
        %v816 = vmax.f32 %v784, 0.0
        %v817 = vmax.f32 %v785, 0.0
        %v818 = vmax.f32 %v786, 0.0
        %v819 = vmax.f32 %v787, 0.0
        %v820 = vmax.f32 %v788, 0.0
        %v821 = vmax.f32 %v789, 0.0
        %v822 = vmax.f32 %v790, 0.0
        %v823 = vmax.f32 %v791, 0.0
        %v824 = vmax.f32 %v792, 0.0
        %v825 = vmax.f32 %v793, 0.0
        %v826 = vmax.f32 %v794, 0.0
        %v827 = vmax.f32 %v795, 0.0
        %v828 = vmax.f32 %v796, 0.0
        %v829 = vmax.f32 %v797, 0.0
        %v830 = vmax.f32 %v798, 0.0
        %v831 = vmax.f32 %v799, 0.0
        %v832 = vmax.f32 %v800, 0.0
        %v833 = vmax.f32 %v801, 0.0
        %v834 = vmax.f32 %v802, 0.0
        %v835 = vmax.f32 %v803, 0.0
        %v836 = vmax.f32 %v804, 0.0
        %v837 = vmax.f32 %v805, 0.0
        %v838 = vmax.f32 %v806, 0.0
        %v839 = vmax.f32 %v807, 0.0
        %v840 = vmax.f32 %v808, 0.0
        %v841 = vmax.f32 %v809, 0.0
        %v842 = vmax.f32 %v810, 0.0
        %v843 = vmax.f32 %v811, 0.0
        %v844 = vmax.f32 %v812, 0.0
        %v845 = vmax.f32 %v813, 0.0
        %v846 = vmax.f32 %v814, 0.0
        %v847 = vpack.c.bf16 %v817, %v815
        %v848 = vpack.c.bf16 %v818, %v816
        %v849 = vpack.c.bf16 %v821, %v819
        %v850 = vpack.c.bf16 %v822, %v820
        %v851 = vpack.c.bf16 %v825, %v823
        %v852 = vpack.c.bf16 %v826, %v824
        %v853 = vpack.c.bf16 %v829, %v827
        %v854 = vpack.c.bf16 %v830, %v828
        %v855 = vpack.c.bf16 %v833, %v831
        %v856 = vpack.c.bf16 %v834, %v832
        %v857 = vpack.c.bf16 %v837, %v835
        %v858 = vpack.c.bf16 %v838, %v836
        %v859 = vpack.c.bf16 %v841, %v839
        %v860 = vpack.c.bf16 %v842, %v840
        %v861 = vpack.c.bf16 %v845, %v843
        %v862 = vpack.c.bf16 %v846, %v844
        %v863 = vld [vmem:[%s3] sm:$0xff]
        %v864 = vld [vmem:[%s3 + $0x8] sm:$0xff]
        %v865 = vld [vmem:[%s3 + $0x10] sm:$0xff]
        %v866 = vld [vmem:[%s3 + $0x18] sm:$0xff]
        %v867 = vld [vmem:[%s3 + $0x20] sm:$0xff]
        %v868 = vld [vmem:[%s3 + $0x28] sm:$0xff]
        %v869 = vld [vmem:[%s3 + $0x30] sm:$0xff]
        %v870 = vld [vmem:[%s3 + $0x38] sm:$0xff]
        %v871 = vld [vmem:[%s3 + $0x40] sm:$0xff]
        %v872 = vld [vmem:[%s3 + $0x48] sm:$0xff]
        %v873 = vld [vmem:[%s3 + $0x50] sm:$0xff]
        %v874 = vld [vmem:[%s3 + $0x58] sm:$0xff]
        %v875 = vld [vmem:[%s3 + $0x60] sm:$0xff]
        %v876 = vld [vmem:[%s3 + $0x68] sm:$0xff]
        %v877 = vld [vmem:[%s3 + $0x70] sm:$0xff]
        %v878 = vld [vmem:[%s3 + $0x78] sm:$0xff]
        %v879 = vld [vmem:[%s3 + $0x80] sm:$0xff]
        %v880 = vld [vmem:[%s3 + $0x88] sm:$0xff]
        %v881 = vld [vmem:[%s3 + $0x90] sm:$0xff]
        %v882 = vld [vmem:[%s3 + $0x98] sm:$0xff]
        %v883 = vld [vmem:[%s3 + $0xa0] sm:$0xff]
        %v884 = vld [vmem:[%s3 + $0xa8] sm:$0xff]
        %v885 = vld [vmem:[%s3 + $0xb0] sm:$0xff]
        %v886 = vld [vmem:[%s3 + $0xb8] sm:$0xff]
        %v887 = vld [vmem:[%s3 + $0xc0] sm:$0xff]
        %v888 = vld [vmem:[%s3 + $0xc8] sm:$0xff]
        %v889 = vld [vmem:[%s3 + $0xd0] sm:$0xff]
        %v890 = vld [vmem:[%s3 + $0xd8] sm:$0xff]
        %v891 = vld [vmem:[%s3 + $0xe0] sm:$0xff]
        %v892 = vld [vmem:[%s3 + $0xe8] sm:$0xff]
        %v893 = vld [vmem:[%s3 + $0xf0] sm:$0xff]
        %v894 = vld [vmem:[%s3 + $0xf8] sm:$0xff]
        %v895 = vld [vmem:[%s4] sm:$0x3]
        %v897 = vperm.slane %v895, 0
        %v898 = vperm.slane %v895, 1
        %v933 = vunpack.c.l.b16 %v863
        %v934 = vunpack.c.h.b16 %v863
        %v935 = vunpack.c.l.b16 %v864
        %v936 = vunpack.c.h.b16 %v864
        %v937 = vunpack.c.l.b16 %v865
        %v938 = vunpack.c.h.b16 %v865
        %v939 = vunpack.c.l.b16 %v866
        %v940 = vunpack.c.h.b16 %v866
        %v941 = vunpack.c.l.b16 %v867
        %v942 = vunpack.c.h.b16 %v867
        %v943 = vunpack.c.l.b16 %v868
        %v944 = vunpack.c.h.b16 %v868
        %v945 = vunpack.c.l.b16 %v869
        %v946 = vunpack.c.h.b16 %v869
        %v947 = vunpack.c.l.b16 %v870
        %v948 = vunpack.c.h.b16 %v870
        %v949 = vunpack.c.l.b16 %v871
        %v950 = vunpack.c.h.b16 %v871
        %v951 = vunpack.c.l.b16 %v872
        %v952 = vunpack.c.h.b16 %v872
        %v953 = vunpack.c.l.b16 %v873
        %v954 = vunpack.c.h.b16 %v873
        %v955 = vunpack.c.l.b16 %v874
        %v956 = vunpack.c.h.b16 %v874
        %v957 = vunpack.c.l.b16 %v875
        %v958 = vunpack.c.h.b16 %v875
        %v959 = vunpack.c.l.b16 %v876
        %v960 = vunpack.c.h.b16 %v876
        %v961 = vunpack.c.l.b16 %v877
        %v962 = vunpack.c.h.b16 %v877
        %v963 = vunpack.c.l.b16 %v878
        %v964 = vunpack.c.h.b16 %v878
        %v965 = vunpack.c.l.b16 %v879
        %v966 = vunpack.c.h.b16 %v879
        %v967 = vunpack.c.l.b16 %v880
        %v968 = vunpack.c.h.b16 %v880
        %v969 = vunpack.c.l.b16 %v881
        %v970 = vunpack.c.h.b16 %v881
        %v971 = vunpack.c.l.b16 %v882
        %v972 = vunpack.c.h.b16 %v882
        %v973 = vunpack.c.l.b16 %v883
        %v974 = vunpack.c.h.b16 %v883
        %v975 = vunpack.c.l.b16 %v884
        %v976 = vunpack.c.h.b16 %v884
        %v977 = vunpack.c.l.b16 %v885
        %v978 = vunpack.c.h.b16 %v885
        %v979 = vunpack.c.l.b16 %v886
        %v980 = vunpack.c.h.b16 %v886
        %v981 = vunpack.c.l.b16 %v887
        %v982 = vunpack.c.h.b16 %v887
        %v983 = vunpack.c.l.b16 %v888
        %v984 = vunpack.c.h.b16 %v888
        %v985 = vunpack.c.l.b16 %v889
        %v986 = vunpack.c.h.b16 %v889
        %v987 = vunpack.c.l.b16 %v890
        %v988 = vunpack.c.h.b16 %v890
        %v989 = vunpack.c.l.b16 %v891
        %v990 = vunpack.c.h.b16 %v891
        %v991 = vunpack.c.l.b16 %v892
        %v992 = vunpack.c.h.b16 %v892
        %v993 = vunpack.c.l.b16 %v893
        %v994 = vunpack.c.h.b16 %v893
        %v995 = vunpack.c.l.b16 %v894
        %v996 = vunpack.c.h.b16 %v894
        %v997 = vpack.c.b16 %v935, %v933
        %v998 = vpack.c.b16 %v936, %v934
        %v999 = vpack.c.b16 %v939, %v937
        %v1000 = vpack.c.b16 %v940, %v938
        %v1001 = vpack.c.b16 %v943, %v941
        %v1002 = vpack.c.b16 %v944, %v942
        %v1003 = vpack.c.b16 %v947, %v945
        %v1004 = vpack.c.b16 %v948, %v946
        %v1005 = vpack.c.b16 %v951, %v949
        %v1006 = vpack.c.b16 %v952, %v950
        %v1007 = vpack.c.b16 %v955, %v953
        %v1008 = vpack.c.b16 %v956, %v954
        %v1009 = vpack.c.b16 %v959, %v957
        %v1010 = vpack.c.b16 %v960, %v958
        %v1011 = vpack.c.b16 %v963, %v961
        %v1012 = vpack.c.b16 %v964, %v962
        %v1013 = vpack.c.b16 %v967, %v965
        %v1014 = vpack.c.b16 %v968, %v966
        %v1015 = vpack.c.b16 %v971, %v969
        %v1016 = vpack.c.b16 %v972, %v970
        %v1017 = vpack.c.b16 %v975, %v973
        %v1018 = vpack.c.b16 %v976, %v974
        %v1019 = vpack.c.b16 %v979, %v977
        %v1020 = vpack.c.b16 %v980, %v978
        %v1021 = vpack.c.b16 %v983, %v981
        %v1022 = vpack.c.b16 %v984, %v982
        %v1023 = vpack.c.b16 %v987, %v985
        %v1024 = vpack.c.b16 %v988, %v986
        %v1025 = vpack.c.b16 %v991, %v989
        %v1026 = vpack.c.b16 %v992, %v990
        %v1027 = vpack.c.b16 %v995, %v993
        %v1028 = vpack.c.b16 %v996, %v994
        %1061 = vmatpush.bf16.msra.mxu0 %v1011
        %1062 = vmatpush.bf16.msra.mxu0 %v1009
        %1063 = vmatpush.bf16.msra.mxu0 %v1007
        %1064 = vmatpush.bf16.msra.mxu0 %v1005
        %1065 = vmatpush.bf16.msra.mxu0 %v1003
        %1066 = vmatpush.bf16.msra.mxu0 %v1001
        %1067 = vmatpush.bf16.msra.mxu0 %v999
        %1068 = vmatpush.bf16.msra.mxu0 %v997
        %1069 = vmatmul.bf16.gmra.mxu0 %v847
        %v1070 = vpop.f32.mrf.mxu0
        %v1071 = vadd.f32 %v897, %v1070
        %v1072 = vpop.f32.mrf.mxu0
        %v1073 = vadd.f32 %v897, %v1072
        %1074 = vmatmul.bf16.gmra.mxu0 %v849
        %v1075 = vpop.f32.mrf.mxu0
        %v1076 = vadd.f32 %v897, %v1075
        %v1077 = vpop.f32.mrf.mxu0
        %v1078 = vadd.f32 %v897, %v1077
        %1079 = vmatmul.bf16.gmra.mxu0 %v851
        %v1080 = vpop.f32.mrf.mxu0
        %v1081 = vadd.f32 %v897, %v1080
        %v1082 = vpop.f32.mrf.mxu0
        %v1083 = vadd.f32 %v897, %v1082
        %1084 = vmatmul.bf16.gmra.mxu0 %v853
        %v1085 = vpop.f32.mrf.mxu0
        %v1086 = vadd.f32 %v897, %v1085
        %v1087 = vpop.f32.mrf.mxu0
        %v1088 = vadd.f32 %v897, %v1087
        %1089 = vmatmul.bf16.gmra.mxu0 %v855
        %v1090 = vpop.f32.mrf.mxu0
        %v1091 = vadd.f32 %v897, %v1090
        %v1092 = vpop.f32.mrf.mxu0
        %v1093 = vadd.f32 %v897, %v1092
        %1094 = vmatmul.bf16.gmra.mxu0 %v857
        %v1095 = vpop.f32.mrf.mxu0
        %v1096 = vadd.f32 %v897, %v1095
        %v1097 = vpop.f32.mrf.mxu0
        %v1098 = vadd.f32 %v897, %v1097
        %1099 = vmatmul.bf16.gmra.mxu0 %v859
        %v1100 = vpop.f32.mrf.mxu0
        %v1101 = vadd.f32 %v897, %v1100
        %v1102 = vpop.f32.mrf.mxu0
        %v1103 = vadd.f32 %v897, %v1102
        %1104 = vmatmul.bf16.gmra.mxu0 %v861
        %v1105 = vpop.f32.mrf.mxu0
        %v1106 = vadd.f32 %v897, %v1105
        %v1107 = vpop.f32.mrf.mxu0
        %v1108 = vadd.f32 %v897, %v1107
        %1109 = vdwg.mxu0
        %1110 = vmatpush.bf16.msra.mxu0 %v1027
        %1111 = vmatpush.bf16.msra.mxu0 %v1025
        %1112 = vmatpush.bf16.msra.mxu0 %v1023
        %1113 = vmatpush.bf16.msra.mxu0 %v1021
        %1114 = vmatpush.bf16.msra.mxu0 %v1019
        %1115 = vmatpush.bf16.msra.mxu0 %v1017
        %1116 = vmatpush.bf16.msra.mxu0 %v1015
        %1117 = vmatpush.bf16.msra.mxu0 %v1013
        %1118 = vmatmul.bf16.gmra.mxu0 %v848
        %v1119 = vpop.f32.mrf.mxu0
        %v1120 = vadd.f32 %v1071, %v1119
        %v1121 = vpop.f32.mrf.mxu0
        %v1122 = vadd.f32 %v1073, %v1121
        %1123 = vmatmul.bf16.gmra.mxu0 %v850
        %v1124 = vpop.f32.mrf.mxu0
        %v1125 = vadd.f32 %v1076, %v1124
        %v1126 = vpop.f32.mrf.mxu0
        %v1127 = vadd.f32 %v1078, %v1126
        %1128 = vmatmul.bf16.gmra.mxu0 %v852
        %v1129 = vpop.f32.mrf.mxu0
        %v1130 = vadd.f32 %v1081, %v1129
        %v1131 = vpop.f32.mrf.mxu0
        %v1132 = vadd.f32 %v1083, %v1131
        %1133 = vmatmul.bf16.gmra.mxu0 %v854
        %v1134 = vpop.f32.mrf.mxu0
        %v1135 = vadd.f32 %v1086, %v1134
        %v1136 = vpop.f32.mrf.mxu0
        %v1137 = vadd.f32 %v1088, %v1136
        %1138 = vmatmul.bf16.gmra.mxu0 %v856
        %v1139 = vpop.f32.mrf.mxu0
        %v1140 = vadd.f32 %v1091, %v1139
        %v1141 = vpop.f32.mrf.mxu0
        %v1142 = vadd.f32 %v1093, %v1141
        %1143 = vmatmul.bf16.gmra.mxu0 %v858
        %v1144 = vpop.f32.mrf.mxu0
        %v1145 = vadd.f32 %v1096, %v1144
        %v1146 = vpop.f32.mrf.mxu0
        %v1147 = vadd.f32 %v1098, %v1146
        %1148 = vmatmul.bf16.gmra.mxu0 %v860
        %v1149 = vpop.f32.mrf.mxu0
        %v1150 = vadd.f32 %v1101, %v1149
        %v1151 = vpop.f32.mrf.mxu0
        %v1152 = vadd.f32 %v1103, %v1151
        %1153 = vmatmul.bf16.gmra.mxu0 %v862
        %v1154 = vpop.f32.mrf.mxu0
        %v1155 = vadd.f32 %v1106, %v1154
        %v1156 = vpop.f32.mrf.mxu0
        %v1157 = vadd.f32 %v1108, %v1156
        %1158 = vdwg.mxu0
        %1159 = vmatpush.bf16.msra.mxu0 %v1012
        %1160 = vmatpush.bf16.msra.mxu0 %v1010
        %1161 = vmatpush.bf16.msra.mxu0 %v1008
        %1162 = vmatpush.bf16.msra.mxu0 %v1006
        %1163 = vmatpush.bf16.msra.mxu0 %v1004
        %1164 = vmatpush.bf16.msra.mxu0 %v1002
        %1165 = vmatpush.bf16.msra.mxu0 %v1000
        %1166 = vmatpush.bf16.msra.mxu0 %v998
        %1167 = vmatmul.bf16.gmra.mxu0 %v847
        %v1168 = vpop.f32.mrf.mxu0
        %v1169 = vadd.f32 %v898, %v1168
        %v1170 = vpop.f32.mrf.mxu0
        %v1171 = vadd.f32 %v898, %v1170
        %1172 = vmatmul.bf16.gmra.mxu0 %v849
        %v1173 = vpop.f32.mrf.mxu0
        %v1174 = vadd.f32 %v898, %v1173
        %v1175 = vpop.f32.mrf.mxu0
        %v1176 = vadd.f32 %v898, %v1175
        %1177 = vmatmul.bf16.gmra.mxu0 %v851
        %v1178 = vpop.f32.mrf.mxu0
        %v1179 = vadd.f32 %v898, %v1178
        %v1180 = vpop.f32.mrf.mxu0
        %v1181 = vadd.f32 %v898, %v1180
        %1182 = vmatmul.bf16.gmra.mxu0 %v853
        %v1183 = vpop.f32.mrf.mxu0
        %v1184 = vadd.f32 %v898, %v1183
        %v1185 = vpop.f32.mrf.mxu0
        %v1186 = vadd.f32 %v898, %v1185
        %1187 = vmatmul.bf16.gmra.mxu0 %v855
        %v1188 = vpop.f32.mrf.mxu0
        %v1189 = vadd.f32 %v898, %v1188
        %v1190 = vpop.f32.mrf.mxu0
        %v1191 = vadd.f32 %v898, %v1190
        %1192 = vmatmul.bf16.gmra.mxu0 %v857
        %v1193 = vpop.f32.mrf.mxu0
        %v1194 = vadd.f32 %v898, %v1193
        %v1195 = vpop.f32.mrf.mxu0
        %v1196 = vadd.f32 %v898, %v1195
        %1197 = vmatmul.bf16.gmra.mxu0 %v859
        %v1198 = vpop.f32.mrf.mxu0
        %v1199 = vadd.f32 %v898, %v1198
        %v1200 = vpop.f32.mrf.mxu0
        %v1201 = vadd.f32 %v898, %v1200
        %1202 = vmatmul.bf16.gmra.mxu0 %v861
        %v1203 = vpop.f32.mrf.mxu0
        %v1204 = vadd.f32 %v898, %v1203
        %v1205 = vpop.f32.mrf.mxu0
        %v1206 = vadd.f32 %v898, %v1205
        %1207 = vdwg.mxu0
        %1208 = vmatpush.bf16.msra.mxu0 %v1028
        %1209 = vmatpush.bf16.msra.mxu0 %v1026
        %1210 = vmatpush.bf16.msra.mxu0 %v1024
        %1211 = vmatpush.bf16.msra.mxu0 %v1022
        %1212 = vmatpush.bf16.msra.mxu0 %v1020
        %1213 = vmatpush.bf16.msra.mxu0 %v1018
        %1214 = vmatpush.bf16.msra.mxu0 %v1016
        %1215 = vmatpush.bf16.msra.mxu0 %v1014
        %1216 = vmatmul.bf16.gmra.mxu0 %v848
        %v1217 = vpop.f32.mrf.mxu0
        %v1218 = vadd.f32 %v1169, %v1217
        %v1219 = vpop.f32.mrf.mxu0
        %v1220 = vadd.f32 %v1171, %v1219
        %1221 = vmatmul.bf16.gmra.mxu0 %v850
        %v1222 = vpop.f32.mrf.mxu0
        %v1223 = vadd.f32 %v1174, %v1222
        %v1224 = vpop.f32.mrf.mxu0
        %v1225 = vadd.f32 %v1176, %v1224
        %1226 = vmatmul.bf16.gmra.mxu0 %v852
        %v1227 = vpop.f32.mrf.mxu0
        %v1228 = vadd.f32 %v1179, %v1227
        %v1229 = vpop.f32.mrf.mxu0
        %v1230 = vadd.f32 %v1181, %v1229
        %1231 = vmatmul.bf16.gmra.mxu0 %v854
        %v1232 = vpop.f32.mrf.mxu0
        %v1233 = vadd.f32 %v1184, %v1232
        %v1234 = vpop.f32.mrf.mxu0
        %v1235 = vadd.f32 %v1186, %v1234
        %1236 = vmatmul.bf16.gmra.mxu0 %v856
        %v1237 = vpop.f32.mrf.mxu0
        %v1238 = vadd.f32 %v1189, %v1237
        %v1239 = vpop.f32.mrf.mxu0
        %v1240 = vadd.f32 %v1191, %v1239
        %1241 = vmatmul.bf16.gmra.mxu0 %v858
        %v1242 = vpop.f32.mrf.mxu0
        %v1243 = vadd.f32 %v1194, %v1242
        %v1244 = vpop.f32.mrf.mxu0
        %v1245 = vadd.f32 %v1196, %v1244
        %1246 = vmatmul.bf16.gmra.mxu0 %v860
        %v1247 = vpop.f32.mrf.mxu0
        %v1248 = vadd.f32 %v1199, %v1247
        %v1249 = vpop.f32.mrf.mxu0
        %v1250 = vadd.f32 %v1201, %v1249
        %1251 = vmatmul.bf16.gmra.mxu0 %v862
        %v1252 = vpop.f32.mrf.mxu0
        %v1253 = vadd.f32 %v1204, %v1252
        %v1254 = vpop.f32.mrf.mxu0
        %v1255 = vadd.f32 %v1206, %v1254
        %1256 = vdwg.mxu0
        %v1257 = vmax.f32 %v1120, 0.0
        %v1258 = vmax.f32 %v1218, 0.0
        %v1259 = vmax.f32 %v1122, 0.0
        %v1260 = vmax.f32 %v1220, 0.0
        %v1261 = vmax.f32 %v1125, 0.0
        %v1262 = vmax.f32 %v1223, 0.0
        %v1263 = vmax.f32 %v1127, 0.0
        %v1264 = vmax.f32 %v1225, 0.0
        %v1265 = vmax.f32 %v1130, 0.0
        %v1266 = vmax.f32 %v1228, 0.0
        %v1267 = vmax.f32 %v1132, 0.0
        %v1268 = vmax.f32 %v1230, 0.0
        %v1269 = vmax.f32 %v1135, 0.0
        %v1270 = vmax.f32 %v1233, 0.0
        %v1271 = vmax.f32 %v1137, 0.0
        %v1272 = vmax.f32 %v1235, 0.0
        %v1273 = vmax.f32 %v1140, 0.0
        %v1274 = vmax.f32 %v1238, 0.0
        %v1275 = vmax.f32 %v1142, 0.0
        %v1276 = vmax.f32 %v1240, 0.0
        %v1277 = vmax.f32 %v1145, 0.0
        %v1278 = vmax.f32 %v1243, 0.0
        %v1279 = vmax.f32 %v1147, 0.0
        %v1280 = vmax.f32 %v1245, 0.0
        %v1281 = vmax.f32 %v1150, 0.0
        %v1282 = vmax.f32 %v1248, 0.0
        %v1283 = vmax.f32 %v1152, 0.0
        %v1284 = vmax.f32 %v1250, 0.0
        %v1285 = vmax.f32 %v1155, 0.0
        %v1286 = vmax.f32 %v1253, 0.0
        %v1287 = vmax.f32 %v1157, 0.0
        %v1288 = vmax.f32 %v1255, 0.0
        %v1289 = vpack.c.bf16 %v1259, %v1257
        %v1290 = vpack.c.bf16 %v1260, %v1258
        %v1291 = vpack.c.bf16 %v1263, %v1261
        %v1292 = vpack.c.bf16 %v1264, %v1262
        %v1293 = vpack.c.bf16 %v1267, %v1265
        %v1294 = vpack.c.bf16 %v1268, %v1266
        %v1295 = vpack.c.bf16 %v1271, %v1269
        %v1296 = vpack.c.bf16 %v1272, %v1270
        %v1297 = vpack.c.bf16 %v1275, %v1273
        %v1298 = vpack.c.bf16 %v1276, %v1274
        %v1299 = vpack.c.bf16 %v1279, %v1277
        %v1300 = vpack.c.bf16 %v1280, %v1278
        %v1301 = vpack.c.bf16 %v1283, %v1281
        %v1302 = vpack.c.bf16 %v1284, %v1282
        %v1303 = vpack.c.bf16 %v1287, %v1285
        %v1304 = vpack.c.bf16 %v1288, %v1286
        %v1305 = vld [vmem:[#allocation2] sm:$0xff]
        %v1306 = vld [vmem:[#allocation2 + $0x8] sm:$0xff]
        %v1307 = vld [vmem:[#allocation2 + $0x10] sm:$0xff]
        %v1308 = vld [vmem:[#allocation2 + $0x18] sm:$0xff]
        %v1309 = vld [vmem:[#allocation2 + $0x20] sm:$0xff]
        %v1310 = vld [vmem:[#allocation2 + $0x28] sm:$0xff]
        %v1311 = vld [vmem:[#allocation2 + $0x30] sm:$0xff]
        %v1312 = vld [vmem:[#allocation2 + $0x38] sm:$0xff]
        %v1313 = vld [vmem:[#allocation2 + $0x40] sm:$0xff]
        %v1314 = vld [vmem:[#allocation2 + $0x48] sm:$0xff]
        %v1315 = vld [vmem:[#allocation2 + $0x50] sm:$0xff]
        %v1316 = vld [vmem:[#allocation2 + $0x58] sm:$0xff]
        %v1317 = vld [vmem:[#allocation2 + $0x60] sm:$0xff]
        %v1318 = vld [vmem:[#allocation2 + $0x68] sm:$0xff]
        %v1319 = vld [vmem:[#allocation2 + $0x70] sm:$0xff]
        %v1320 = vld [vmem:[#allocation2 + $0x78] sm:$0xff]
        %v1321 = vld [vmem:[#allocation2 + $0x80] sm:$0xff]
        %v1322 = vld [vmem:[#allocation2 + $0x88] sm:$0xff]
        %v1323 = vld [vmem:[#allocation2 + $0x90] sm:$0xff]
        %v1324 = vld [vmem:[#allocation2 + $0x98] sm:$0xff]
        %v1325 = vld [vmem:[#allocation2 + $0xa0] sm:$0xff]
        %v1326 = vld [vmem:[#allocation2 + $0xa8] sm:$0xff]
        %v1327 = vld [vmem:[#allocation2 + $0xb0] sm:$0xff]
        %v1328 = vld [vmem:[#allocation2 + $0xb8] sm:$0xff]
        %v1329 = vld [vmem:[#allocation2 + $0xc0] sm:$0xff]
        %v1330 = vld [vmem:[#allocation2 + $0xc8] sm:$0xff]
        %v1331 = vld [vmem:[#allocation2 + $0xd0] sm:$0xff]
        %v1332 = vld [vmem:[#allocation2 + $0xd8] sm:$0xff]
        %v1333 = vld [vmem:[#allocation2 + $0xe0] sm:$0xff]
        %v1334 = vld [vmem:[#allocation2 + $0xe8] sm:$0xff]
        %v1335 = vld [vmem:[#allocation2 + $0xf0] sm:$0xff]
        %v1336 = vld [vmem:[#allocation2 + $0xf8] sm:$0xff]
        %v1337 = vld [vmem:[%s6] sm:$0x3]
        %v1339 = vperm.slane %v1337, 0
        %v1340 = vperm.slane %v1337, 1
        %v1375 = vunpack.c.l.b16 %v1305
        %v1376 = vunpack.c.h.b16 %v1305
        %v1377 = vunpack.c.l.b16 %v1306
        %v1378 = vunpack.c.h.b16 %v1306
        %v1379 = vunpack.c.l.b16 %v1307
        %v1380 = vunpack.c.h.b16 %v1307
        %v1381 = vunpack.c.l.b16 %v1308
        %v1382 = vunpack.c.h.b16 %v1308
        %v1383 = vunpack.c.l.b16 %v1309
        %v1384 = vunpack.c.h.b16 %v1309
        %v1385 = vunpack.c.l.b16 %v1310
        %v1386 = vunpack.c.h.b16 %v1310
        %v1387 = vunpack.c.l.b16 %v1311
        %v1388 = vunpack.c.h.b16 %v1311
        %v1389 = vunpack.c.l.b16 %v1312
        %v1390 = vunpack.c.h.b16 %v1312
        %v1391 = vunpack.c.l.b16 %v1313
        %v1392 = vunpack.c.h.b16 %v1313
        %v1393 = vunpack.c.l.b16 %v1314
        %v1394 = vunpack.c.h.b16 %v1314
        %v1395 = vunpack.c.l.b16 %v1315
        %v1396 = vunpack.c.h.b16 %v1315
        %v1397 = vunpack.c.l.b16 %v1316
        %v1398 = vunpack.c.h.b16 %v1316
        %v1399 = vunpack.c.l.b16 %v1317
        %v1400 = vunpack.c.h.b16 %v1317
        %v1401 = vunpack.c.l.b16 %v1318
        %v1402 = vunpack.c.h.b16 %v1318
        %v1403 = vunpack.c.l.b16 %v1319
        %v1404 = vunpack.c.h.b16 %v1319
        %v1405 = vunpack.c.l.b16 %v1320
        %v1406 = vunpack.c.h.b16 %v1320
        %v1407 = vunpack.c.l.b16 %v1321
        %v1408 = vunpack.c.h.b16 %v1321
        %v1409 = vunpack.c.l.b16 %v1322
        %v1410 = vunpack.c.h.b16 %v1322
        %v1411 = vunpack.c.l.b16 %v1323
        %v1412 = vunpack.c.h.b16 %v1323
        %v1413 = vunpack.c.l.b16 %v1324
        %v1414 = vunpack.c.h.b16 %v1324
        %v1415 = vunpack.c.l.b16 %v1325
        %v1416 = vunpack.c.h.b16 %v1325
        %v1417 = vunpack.c.l.b16 %v1326
        %v1418 = vunpack.c.h.b16 %v1326
        %v1419 = vunpack.c.l.b16 %v1327
        %v1420 = vunpack.c.h.b16 %v1327
        %v1421 = vunpack.c.l.b16 %v1328
        %v1422 = vunpack.c.h.b16 %v1328
        %v1423 = vunpack.c.l.b16 %v1329
        %v1424 = vunpack.c.h.b16 %v1329
        %v1425 = vunpack.c.l.b16 %v1330
        %v1426 = vunpack.c.h.b16 %v1330
        %v1427 = vunpack.c.l.b16 %v1331
        %v1428 = vunpack.c.h.b16 %v1331
        %v1429 = vunpack.c.l.b16 %v1332
        %v1430 = vunpack.c.h.b16 %v1332
        %v1431 = vunpack.c.l.b16 %v1333
        %v1432 = vunpack.c.h.b16 %v1333
        %v1433 = vunpack.c.l.b16 %v1334
        %v1434 = vunpack.c.h.b16 %v1334
        %v1435 = vunpack.c.l.b16 %v1335
        %v1436 = vunpack.c.h.b16 %v1335
        %v1437 = vunpack.c.l.b16 %v1336
        %v1438 = vunpack.c.h.b16 %v1336
        %v1439 = vpack.c.b16 %v1377, %v1375
        %v1440 = vpack.c.b16 %v1378, %v1376
        %v1441 = vpack.c.b16 %v1381, %v1379
        %v1442 = vpack.c.b16 %v1382, %v1380
        %v1443 = vpack.c.b16 %v1385, %v1383
        %v1444 = vpack.c.b16 %v1386, %v1384
        %v1445 = vpack.c.b16 %v1389, %v1387
        %v1446 = vpack.c.b16 %v1390, %v1388
        %v1447 = vpack.c.b16 %v1393, %v1391
        %v1448 = vpack.c.b16 %v1394, %v1392
        %v1449 = vpack.c.b16 %v1397, %v1395
        %v1450 = vpack.c.b16 %v1398, %v1396
        %v1451 = vpack.c.b16 %v1401, %v1399
        %v1452 = vpack.c.b16 %v1402, %v1400
        %v1453 = vpack.c.b16 %v1405, %v1403
        %v1454 = vpack.c.b16 %v1406, %v1404
        %v1455 = vpack.c.b16 %v1409, %v1407
        %v1456 = vpack.c.b16 %v1410, %v1408
        %v1457 = vpack.c.b16 %v1413, %v1411
        %v1458 = vpack.c.b16 %v1414, %v1412
        %v1459 = vpack.c.b16 %v1417, %v1415
        %v1460 = vpack.c.b16 %v1418, %v1416
        %v1461 = vpack.c.b16 %v1421, %v1419
        %v1462 = vpack.c.b16 %v1422, %v1420
        %v1463 = vpack.c.b16 %v1425, %v1423
        %v1464 = vpack.c.b16 %v1426, %v1424
        %v1465 = vpack.c.b16 %v1429, %v1427
        %v1466 = vpack.c.b16 %v1430, %v1428
        %v1467 = vpack.c.b16 %v1433, %v1431
        %v1468 = vpack.c.b16 %v1434, %v1432
        %v1469 = vpack.c.b16 %v1437, %v1435
        %v1470 = vpack.c.b16 %v1438, %v1436
        %1503 = vmatpush.bf16.msra.mxu0 %v1453
        %1504 = vmatpush.bf16.msra.mxu0 %v1451
        %1505 = vmatpush.bf16.msra.mxu0 %v1449
        %1506 = vmatpush.bf16.msra.mxu0 %v1447
        %1507 = vmatpush.bf16.msra.mxu0 %v1445
        %1508 = vmatpush.bf16.msra.mxu0 %v1443
        %1509 = vmatpush.bf16.msra.mxu0 %v1441
        %1510 = vmatpush.bf16.msra.mxu0 %v1439
        %1511 = vmatmul.bf16.gmra.mxu0 %v1289
        %v1512 = vpop.f32.mrf.mxu0
        %v1513 = vadd.f32 %v1339, %v1512
        %v1514 = vpop.f32.mrf.mxu0
        %v1515 = vadd.f32 %v1339, %v1514
        %1516 = vmatmul.bf16.gmra.mxu0 %v1291
        %v1517 = vpop.f32.mrf.mxu0
        %v1518 = vadd.f32 %v1339, %v1517
        %v1519 = vpop.f32.mrf.mxu0
        %v1520 = vadd.f32 %v1339, %v1519
        %1521 = vmatmul.bf16.gmra.mxu0 %v1293
        %v1522 = vpop.f32.mrf.mxu0
        %v1523 = vadd.f32 %v1339, %v1522
        %v1524 = vpop.f32.mrf.mxu0
        %v1525 = vadd.f32 %v1339, %v1524
        %1526 = vmatmul.bf16.gmra.mxu0 %v1295
        %v1527 = vpop.f32.mrf.mxu0
        %v1528 = vadd.f32 %v1339, %v1527
        %v1529 = vpop.f32.mrf.mxu0
        %v1530 = vadd.f32 %v1339, %v1529
        %1531 = vmatmul.bf16.gmra.mxu0 %v1297
        %v1532 = vpop.f32.mrf.mxu0
        %v1533 = vadd.f32 %v1339, %v1532
        %v1534 = vpop.f32.mrf.mxu0
        %v1535 = vadd.f32 %v1339, %v1534
        %1536 = vmatmul.bf16.gmra.mxu0 %v1299
        %v1537 = vpop.f32.mrf.mxu0
        %v1538 = vadd.f32 %v1339, %v1537
        %v1539 = vpop.f32.mrf.mxu0
        %v1540 = vadd.f32 %v1339, %v1539
        %1541 = vmatmul.bf16.gmra.mxu0 %v1301
        %v1542 = vpop.f32.mrf.mxu0
        %v1543 = vadd.f32 %v1339, %v1542
        %v1544 = vpop.f32.mrf.mxu0
        %v1545 = vadd.f32 %v1339, %v1544
        %1546 = vmatmul.bf16.gmra.mxu0 %v1303
        %v1547 = vpop.f32.mrf.mxu0
        %v1548 = vadd.f32 %v1339, %v1547
        %v1549 = vpop.f32.mrf.mxu0
        %v1550 = vadd.f32 %v1339, %v1549
        %1551 = vdwg.mxu0
        %1552 = vmatpush.bf16.msra.mxu0 %v1469
        %1553 = vmatpush.bf16.msra.mxu0 %v1467
        %1554 = vmatpush.bf16.msra.mxu0 %v1465
        %1555 = vmatpush.bf16.msra.mxu0 %v1463
        %1556 = vmatpush.bf16.msra.mxu0 %v1461
        %1557 = vmatpush.bf16.msra.mxu0 %v1459
        %1558 = vmatpush.bf16.msra.mxu0 %v1457
        %1559 = vmatpush.bf16.msra.mxu0 %v1455
        %1560 = vmatmul.bf16.gmra.mxu0 %v1290
        %v1561 = vpop.f32.mrf.mxu0
        %v1562 = vadd.f32 %v1513, %v1561
        %v1563 = vpop.f32.mrf.mxu0
        %v1564 = vadd.f32 %v1515, %v1563
        %1565 = vmatmul.bf16.gmra.mxu0 %v1292
        %v1566 = vpop.f32.mrf.mxu0
        %v1567 = vadd.f32 %v1518, %v1566
        %v1568 = vpop.f32.mrf.mxu0
        %v1569 = vadd.f32 %v1520, %v1568
        %1570 = vmatmul.bf16.gmra.mxu0 %v1294
        %v1571 = vpop.f32.mrf.mxu0
        %v1572 = vadd.f32 %v1523, %v1571
        %v1573 = vpop.f32.mrf.mxu0
        %v1574 = vadd.f32 %v1525, %v1573
        %1575 = vmatmul.bf16.gmra.mxu0 %v1296
        %v1576 = vpop.f32.mrf.mxu0
        %v1577 = vadd.f32 %v1528, %v1576
        %v1578 = vpop.f32.mrf.mxu0
        %v1579 = vadd.f32 %v1530, %v1578
        %1580 = vmatmul.bf16.gmra.mxu0 %v1298
        %v1581 = vpop.f32.mrf.mxu0
        %v1582 = vadd.f32 %v1533, %v1581
        %v1583 = vpop.f32.mrf.mxu0
        %v1584 = vadd.f32 %v1535, %v1583
        %1585 = vmatmul.bf16.gmra.mxu0 %v1300
        %v1586 = vpop.f32.mrf.mxu0
        %v1587 = vadd.f32 %v1538, %v1586
        %v1588 = vpop.f32.mrf.mxu0
        %v1589 = vadd.f32 %v1540, %v1588
        %1590 = vmatmul.bf16.gmra.mxu0 %v1302
        %v1591 = vpop.f32.mrf.mxu0
        %v1592 = vadd.f32 %v1543, %v1591
        %v1593 = vpop.f32.mrf.mxu0
        %v1594 = vadd.f32 %v1545, %v1593
        %1595 = vmatmul.bf16.gmra.mxu0 %v1304
        %v1596 = vpop.f32.mrf.mxu0
        %v1597 = vadd.f32 %v1548, %v1596
        %v1598 = vpop.f32.mrf.mxu0
        %v1599 = vadd.f32 %v1550, %v1598
        %1600 = vdwg.mxu0
        %1601 = vmatpush.bf16.msra.mxu0 %v1454
        %1602 = vmatpush.bf16.msra.mxu0 %v1452
        %1603 = vmatpush.bf16.msra.mxu0 %v1450
        %1604 = vmatpush.bf16.msra.mxu0 %v1448
        %1605 = vmatpush.bf16.msra.mxu0 %v1446
        %1606 = vmatpush.bf16.msra.mxu0 %v1444
        %1607 = vmatpush.bf16.msra.mxu0 %v1442
        %1608 = vmatpush.bf16.msra.mxu0 %v1440
        %1609 = vmatmul.bf16.gmra.mxu0 %v1289
        %v1610 = vpop.f32.mrf.mxu0
        %v1611 = vadd.f32 %v1340, %v1610
        %v1612 = vpop.f32.mrf.mxu0
        %v1613 = vadd.f32 %v1340, %v1612
        %1614 = vmatmul.bf16.gmra.mxu0 %v1291
        %v1615 = vpop.f32.mrf.mxu0
        %v1616 = vadd.f32 %v1340, %v1615
        %v1617 = vpop.f32.mrf.mxu0
        %v1618 = vadd.f32 %v1340, %v1617
        %1619 = vmatmul.bf16.gmra.mxu0 %v1293
        %v1620 = vpop.f32.mrf.mxu0
        %v1621 = vadd.f32 %v1340, %v1620
        %v1622 = vpop.f32.mrf.mxu0
        %v1623 = vadd.f32 %v1340, %v1622
        %1624 = vmatmul.bf16.gmra.mxu0 %v1295
        %v1625 = vpop.f32.mrf.mxu0
        %v1626 = vadd.f32 %v1340, %v1625
        %v1627 = vpop.f32.mrf.mxu0
        %v1628 = vadd.f32 %v1340, %v1627
        %1629 = vmatmul.bf16.gmra.mxu0 %v1297
        %v1630 = vpop.f32.mrf.mxu0
        %v1631 = vadd.f32 %v1340, %v1630
        %v1632 = vpop.f32.mrf.mxu0
        %v1633 = vadd.f32 %v1340, %v1632
        %1634 = vmatmul.bf16.gmra.mxu0 %v1299
        %v1635 = vpop.f32.mrf.mxu0
        %v1636 = vadd.f32 %v1340, %v1635
        %v1637 = vpop.f32.mrf.mxu0
        %v1638 = vadd.f32 %v1340, %v1637
        %1639 = vmatmul.bf16.gmra.mxu0 %v1301
        %v1640 = vpop.f32.mrf.mxu0
        %v1641 = vadd.f32 %v1340, %v1640
        %v1642 = vpop.f32.mrf.mxu0
        %v1643 = vadd.f32 %v1340, %v1642
        %1644 = vmatmul.bf16.gmra.mxu0 %v1303
        %v1645 = vpop.f32.mrf.mxu0
        %v1646 = vadd.f32 %v1340, %v1645
        %v1647 = vpop.f32.mrf.mxu0
        %v1648 = vadd.f32 %v1340, %v1647
        %1649 = vdwg.mxu0
        %1650 = vmatpush.bf16.msra.mxu0 %v1470
        %1651 = vmatpush.bf16.msra.mxu0 %v1468
        %1652 = vmatpush.bf16.msra.mxu0 %v1466
        %1653 = vmatpush.bf16.msra.mxu0 %v1464
        %1654 = vmatpush.bf16.msra.mxu0 %v1462
        %1655 = vmatpush.bf16.msra.mxu0 %v1460
        %1656 = vmatpush.bf16.msra.mxu0 %v1458
        %1657 = vmatpush.bf16.msra.mxu0 %v1456
        %1658 = vmatmul.bf16.gmra.mxu0 %v1290
        %v1659 = vpop.f32.mrf.mxu0
        %v1660 = vadd.f32 %v1611, %v1659
        %v1661 = vpop.f32.mrf.mxu0
        %v1662 = vadd.f32 %v1613, %v1661
        %1663 = vmatmul.bf16.gmra.mxu0 %v1292
        %v1664 = vpop.f32.mrf.mxu0
        %v1665 = vadd.f32 %v1616, %v1664
        %v1666 = vpop.f32.mrf.mxu0
        %v1667 = vadd.f32 %v1618, %v1666
        %1668 = vmatmul.bf16.gmra.mxu0 %v1294
        %v1669 = vpop.f32.mrf.mxu0
        %v1670 = vadd.f32 %v1621, %v1669
        %v1671 = vpop.f32.mrf.mxu0
        %v1672 = vadd.f32 %v1623, %v1671
        %1673 = vmatmul.bf16.gmra.mxu0 %v1296
        %v1674 = vpop.f32.mrf.mxu0
        %v1675 = vadd.f32 %v1626, %v1674
        %v1676 = vpop.f32.mrf.mxu0
        %v1677 = vadd.f32 %v1628, %v1676
        %1678 = vmatmul.bf16.gmra.mxu0 %v1298
        %v1679 = vpop.f32.mrf.mxu0
        %v1680 = vadd.f32 %v1631, %v1679
        %v1681 = vpop.f32.mrf.mxu0
        %v1682 = vadd.f32 %v1633, %v1681
        %1683 = vmatmul.bf16.gmra.mxu0 %v1300
        %v1684 = vpop.f32.mrf.mxu0
        %v1685 = vadd.f32 %v1636, %v1684
        %v1686 = vpop.f32.mrf.mxu0
        %v1687 = vadd.f32 %v1638, %v1686
        %1688 = vmatmul.bf16.gmra.mxu0 %v1302
        %v1689 = vpop.f32.mrf.mxu0
        %v1690 = vadd.f32 %v1641, %v1689
        %v1691 = vpop.f32.mrf.mxu0
        %v1692 = vadd.f32 %v1643, %v1691
        %1693 = vmatmul.bf16.gmra.mxu0 %v1304
        %v1694 = vpop.f32.mrf.mxu0
        %v1695 = vadd.f32 %v1646, %v1694
        %v1696 = vpop.f32.mrf.mxu0
        %v1697 = vadd.f32 %v1648, %v1696
        %1698 = vdwg.mxu0
        %v1699 = vmax.f32 %v1562, 0.0
        %v1700 = vmax.f32 %v1660, 0.0
        %v1701 = vmax.f32 %v1564, 0.0
        %v1702 = vmax.f32 %v1662, 0.0
        %v1703 = vmax.f32 %v1567, 0.0
        %v1704 = vmax.f32 %v1665, 0.0
        %v1705 = vmax.f32 %v1569, 0.0
        %v1706 = vmax.f32 %v1667, 0.0
        %v1707 = vmax.f32 %v1572, 0.0
        %v1708 = vmax.f32 %v1670, 0.0
        %v1709 = vmax.f32 %v1574, 0.0
        %v1710 = vmax.f32 %v1672, 0.0
        %v1711 = vmax.f32 %v1577, 0.0
        %v1712 = vmax.f32 %v1675, 0.0
        %v1713 = vmax.f32 %v1579, 0.0
        %v1714 = vmax.f32 %v1677, 0.0
        %v1715 = vmax.f32 %v1582, 0.0
        %v1716 = vmax.f32 %v1680, 0.0
        %v1717 = vmax.f32 %v1584, 0.0
        %v1718 = vmax.f32 %v1682, 0.0
        %v1719 = vmax.f32 %v1587, 0.0
        %v1720 = vmax.f32 %v1685, 0.0
        %v1721 = vmax.f32 %v1589, 0.0
        %v1722 = vmax.f32 %v1687, 0.0
        %v1723 = vmax.f32 %v1592, 0.0
        %v1724 = vmax.f32 %v1690, 0.0
        %v1725 = vmax.f32 %v1594, 0.0
        %v1726 = vmax.f32 %v1692, 0.0
        %v1727 = vmax.f32 %v1597, 0.0
        %v1728 = vmax.f32 %v1695, 0.0
        %v1729 = vmax.f32 %v1599, 0.0
        %v1730 = vmax.f32 %v1697, 0.0
        %v1731 = vpack.c.bf16 %v1701, %v1699
        %v1732 = vpack.c.bf16 %v1702, %v1700
        %v1733 = vpack.c.bf16 %v1705, %v1703
        %v1734 = vpack.c.bf16 %v1706, %v1704
        %v1735 = vpack.c.bf16 %v1709, %v1707
        %v1736 = vpack.c.bf16 %v1710, %v1708
        %v1737 = vpack.c.bf16 %v1713, %v1711
        %v1738 = vpack.c.bf16 %v1714, %v1712
        %v1739 = vpack.c.bf16 %v1717, %v1715
        %v1740 = vpack.c.bf16 %v1718, %v1716
        %v1741 = vpack.c.bf16 %v1721, %v1719
        %v1742 = vpack.c.bf16 %v1722, %v1720
        %v1743 = vpack.c.bf16 %v1725, %v1723
        %v1744 = vpack.c.bf16 %v1726, %v1724
        %v1745 = vpack.c.bf16 %v1729, %v1727
        %v1746 = vpack.c.bf16 %v1730, %v1728
        %v1747 = vld [vmem:[#allocation5] sm:$0xff]
        %v1748 = vld [vmem:[#allocation5 + $0x8] sm:$0xff]
        %v1749 = vld [vmem:[#allocation5 + $0x10] sm:$0xff]
        %v1750 = vld [vmem:[#allocation5 + $0x18] sm:$0xff]
        %v1751 = vld [vmem:[#allocation5 + $0x20] sm:$0xff]
        %v1752 = vld [vmem:[#allocation5 + $0x28] sm:$0xff]
        %v1753 = vld [vmem:[#allocation5 + $0x30] sm:$0xff]
        %v1754 = vld [vmem:[#allocation5 + $0x38] sm:$0xff]
        %v1755 = vld [vmem:[#allocation5 + $0x40] sm:$0xff]
        %v1756 = vld [vmem:[#allocation5 + $0x48] sm:$0xff]
        %v1757 = vld [vmem:[#allocation5 + $0x50] sm:$0xff]
        %v1758 = vld [vmem:[#allocation5 + $0x58] sm:$0xff]
        %v1759 = vld [vmem:[#allocation5 + $0x60] sm:$0xff]
        %v1760 = vld [vmem:[#allocation5 + $0x68] sm:$0xff]
        %v1761 = vld [vmem:[#allocation5 + $0x70] sm:$0xff]
        %v1762 = vld [vmem:[#allocation5 + $0x78] sm:$0xff]
        %v1763 = vld [vmem:[#allocation5 + $0x80] sm:$0xff]
        %v1764 = vld [vmem:[#allocation5 + $0x88] sm:$0xff]
        %v1765 = vld [vmem:[#allocation5 + $0x90] sm:$0xff]
        %v1766 = vld [vmem:[#allocation5 + $0x98] sm:$0xff]
        %v1767 = vld [vmem:[#allocation5 + $0xa0] sm:$0xff]
        %v1768 = vld [vmem:[#allocation5 + $0xa8] sm:$0xff]
        %v1769 = vld [vmem:[#allocation5 + $0xb0] sm:$0xff]
        %v1770 = vld [vmem:[#allocation5 + $0xb8] sm:$0xff]
        %v1771 = vld [vmem:[#allocation5 + $0xc0] sm:$0xff]
        %v1772 = vld [vmem:[#allocation5 + $0xc8] sm:$0xff]
        %v1773 = vld [vmem:[#allocation5 + $0xd0] sm:$0xff]
        %v1774 = vld [vmem:[#allocation5 + $0xd8] sm:$0xff]
        %v1775 = vld [vmem:[#allocation5 + $0xe0] sm:$0xff]
        %v1776 = vld [vmem:[#allocation5 + $0xe8] sm:$0xff]
        %v1777 = vld [vmem:[#allocation5 + $0xf0] sm:$0xff]
        %v1778 = vld [vmem:[#allocation5 + $0xf8] sm:$0xff]
        %v1779 = vld [vmem:[#allocation7] sm:$0x3]
        %v1781 = vperm.slane %v1779, 0
        %v1782 = vperm.slane %v1779, 1
        %v1817 = vunpack.c.l.b16 %v1747
        %v1818 = vunpack.c.h.b16 %v1747
        %v1819 = vunpack.c.l.b16 %v1748
        %v1820 = vunpack.c.h.b16 %v1748
        %v1821 = vunpack.c.l.b16 %v1749
        %v1822 = vunpack.c.h.b16 %v1749
        %v1823 = vunpack.c.l.b16 %v1750
        %v1824 = vunpack.c.h.b16 %v1750
        %v1825 = vunpack.c.l.b16 %v1751
        %v1826 = vunpack.c.h.b16 %v1751
        %v1827 = vunpack.c.l.b16 %v1752
        %v1828 = vunpack.c.h.b16 %v1752
        %v1829 = vunpack.c.l.b16 %v1753
        %v1830 = vunpack.c.h.b16 %v1753
        %v1831 = vunpack.c.l.b16 %v1754
        %v1832 = vunpack.c.h.b16 %v1754
        %v1833 = vunpack.c.l.b16 %v1755
        %v1834 = vunpack.c.h.b16 %v1755
        %v1835 = vunpack.c.l.b16 %v1756
        %v1836 = vunpack.c.h.b16 %v1756
        %v1837 = vunpack.c.l.b16 %v1757
        %v1838 = vunpack.c.h.b16 %v1757
        %v1839 = vunpack.c.l.b16 %v1758
        %v1840 = vunpack.c.h.b16 %v1758
        %v1841 = vunpack.c.l.b16 %v1759
        %v1842 = vunpack.c.h.b16 %v1759
        %v1843 = vunpack.c.l.b16 %v1760
        %v1844 = vunpack.c.h.b16 %v1760
        %v1845 = vunpack.c.l.b16 %v1761
        %v1846 = vunpack.c.h.b16 %v1761
        %v1847 = vunpack.c.l.b16 %v1762
        %v1848 = vunpack.c.h.b16 %v1762
        %v1849 = vunpack.c.l.b16 %v1763
        %v1850 = vunpack.c.h.b16 %v1763
        %v1851 = vunpack.c.l.b16 %v1764
        %v1852 = vunpack.c.h.b16 %v1764
        %v1853 = vunpack.c.l.b16 %v1765
        %v1854 = vunpack.c.h.b16 %v1765
        %v1855 = vunpack.c.l.b16 %v1766
        %v1856 = vunpack.c.h.b16 %v1766
        %v1857 = vunpack.c.l.b16 %v1767
        %v1858 = vunpack.c.h.b16 %v1767
        %v1859 = vunpack.c.l.b16 %v1768
        %v1860 = vunpack.c.h.b16 %v1768
        %v1861 = vunpack.c.l.b16 %v1769
        %v1862 = vunpack.c.h.b16 %v1769
        %v1863 = vunpack.c.l.b16 %v1770
        %v1864 = vunpack.c.h.b16 %v1770
        %v1865 = vunpack.c.l.b16 %v1771
        %v1866 = vunpack.c.h.b16 %v1771
        %v1867 = vunpack.c.l.b16 %v1772
        %v1868 = vunpack.c.h.b16 %v1772
        %v1869 = vunpack.c.l.b16 %v1773
        %v1870 = vunpack.c.h.b16 %v1773
        %v1871 = vunpack.c.l.b16 %v1774
        %v1872 = vunpack.c.h.b16 %v1774
        %v1873 = vunpack.c.l.b16 %v1775
        %v1874 = vunpack.c.h.b16 %v1775
        %v1875 = vunpack.c.l.b16 %v1776
        %v1876 = vunpack.c.h.b16 %v1776
        %v1877 = vunpack.c.l.b16 %v1777
        %v1878 = vunpack.c.h.b16 %v1777
        %v1879 = vunpack.c.l.b16 %v1778
        %v1880 = vunpack.c.h.b16 %v1778
        %v1881 = vpack.c.b16 %v1819, %v1817
        %v1882 = vpack.c.b16 %v1820, %v1818
        %v1883 = vpack.c.b16 %v1823, %v1821
        %v1884 = vpack.c.b16 %v1824, %v1822
        %v1885 = vpack.c.b16 %v1827, %v1825
        %v1886 = vpack.c.b16 %v1828, %v1826
        %v1887 = vpack.c.b16 %v1831, %v1829
        %v1888 = vpack.c.b16 %v1832, %v1830
        %v1889 = vpack.c.b16 %v1835, %v1833
        %v1890 = vpack.c.b16 %v1836, %v1834
        %v1891 = vpack.c.b16 %v1839, %v1837
        %v1892 = vpack.c.b16 %v1840, %v1838
        %v1893 = vpack.c.b16 %v1843, %v1841
        %v1894 = vpack.c.b16 %v1844, %v1842
        %v1895 = vpack.c.b16 %v1847, %v1845
        %v1896 = vpack.c.b16 %v1848, %v1846
        %v1897 = vpack.c.b16 %v1851, %v1849
        %v1898 = vpack.c.b16 %v1852, %v1850
        %v1899 = vpack.c.b16 %v1855, %v1853
        %v1900 = vpack.c.b16 %v1856, %v1854
        %v1901 = vpack.c.b16 %v1859, %v1857
        %v1902 = vpack.c.b16 %v1860, %v1858
        %v1903 = vpack.c.b16 %v1863, %v1861
        %v1904 = vpack.c.b16 %v1864, %v1862
        %v1905 = vpack.c.b16 %v1867, %v1865
        %v1906 = vpack.c.b16 %v1868, %v1866
        %v1907 = vpack.c.b16 %v1871, %v1869
        %v1908 = vpack.c.b16 %v1872, %v1870
        %v1909 = vpack.c.b16 %v1875, %v1873
        %v1910 = vpack.c.b16 %v1876, %v1874
        %v1911 = vpack.c.b16 %v1879, %v1877
        %v1912 = vpack.c.b16 %v1880, %v1878
        %1945 = vmatpush.bf16.msra.mxu0 %v1895
        %1946 = vmatpush.bf16.msra.mxu0 %v1893
        %1947 = vmatpush.bf16.msra.mxu0 %v1891
        %1948 = vmatpush.bf16.msra.mxu0 %v1889
        %1949 = vmatpush.bf16.msra.mxu0 %v1887
        %1950 = vmatpush.bf16.msra.mxu0 %v1885
        %1951 = vmatpush.bf16.msra.mxu0 %v1883
        %1952 = vmatpush.bf16.msra.mxu0 %v1881
        %1953 = vmatmul.bf16.gmra.mxu0 %v1731
        %v1954 = vpop.f32.mrf.mxu0
        %v1955 = vadd.f32 %v1781, %v1954
        %v1956 = vpop.f32.mrf.mxu0
        %v1957 = vadd.f32 %v1781, %v1956
        %1958 = vmatmul.bf16.gmra.mxu0 %v1733
        %v1959 = vpop.f32.mrf.mxu0
        %v1960 = vadd.f32 %v1781, %v1959
        %v1961 = vpop.f32.mrf.mxu0
        %v1962 = vadd.f32 %v1781, %v1961
        %1963 = vmatmul.bf16.gmra.mxu0 %v1735
        %v1964 = vpop.f32.mrf.mxu0
        %v1965 = vadd.f32 %v1781, %v1964
        %v1966 = vpop.f32.mrf.mxu0
        %v1967 = vadd.f32 %v1781, %v1966
        %1968 = vmatmul.bf16.gmra.mxu0 %v1737
        %v1969 = vpop.f32.mrf.mxu0
        %v1970 = vadd.f32 %v1781, %v1969
        %v1971 = vpop.f32.mrf.mxu0
        %v1972 = vadd.f32 %v1781, %v1971
        %1973 = vmatmul.bf16.gmra.mxu0 %v1739
        %v1974 = vpop.f32.mrf.mxu0
        %v1975 = vadd.f32 %v1781, %v1974
        %v1976 = vpop.f32.mrf.mxu0
        %v1977 = vadd.f32 %v1781, %v1976
        %1978 = vmatmul.bf16.gmra.mxu0 %v1741
        %v1979 = vpop.f32.mrf.mxu0
        %v1980 = vadd.f32 %v1781, %v1979
        %v1981 = vpop.f32.mrf.mxu0
        %v1982 = vadd.f32 %v1781, %v1981
        %1983 = vmatmul.bf16.gmra.mxu0 %v1743
        %v1984 = vpop.f32.mrf.mxu0
        %v1985 = vadd.f32 %v1781, %v1984
        %v1986 = vpop.f32.mrf.mxu0
        %v1987 = vadd.f32 %v1781, %v1986
        %1988 = vmatmul.bf16.gmra.mxu0 %v1745
        %v1989 = vpop.f32.mrf.mxu0
        %v1990 = vadd.f32 %v1781, %v1989
        %v1991 = vpop.f32.mrf.mxu0
        %v1992 = vadd.f32 %v1781, %v1991
        %1993 = vdwg.mxu0
        %1994 = vmatpush.bf16.msra.mxu0 %v1911
        %1995 = vmatpush.bf16.msra.mxu0 %v1909
        %1996 = vmatpush.bf16.msra.mxu0 %v1907
        %1997 = vmatpush.bf16.msra.mxu0 %v1905
        %1998 = vmatpush.bf16.msra.mxu0 %v1903
        %1999 = vmatpush.bf16.msra.mxu0 %v1901
        %2000 = vmatpush.bf16.msra.mxu0 %v1899
        %2001 = vmatpush.bf16.msra.mxu0 %v1897
        %2002 = vmatmul.bf16.gmra.mxu0 %v1732
        %v2003 = vpop.f32.mrf.mxu0
        %v2004 = vadd.f32 %v1955, %v2003
        %v2005 = vpop.f32.mrf.mxu0
        %v2006 = vadd.f32 %v1957, %v2005
        %2007 = vmatmul.bf16.gmra.mxu0 %v1734
        %v2008 = vpop.f32.mrf.mxu0
        %v2009 = vadd.f32 %v1960, %v2008
        %v2010 = vpop.f32.mrf.mxu0
        %v2011 = vadd.f32 %v1962, %v2010
        %2012 = vmatmul.bf16.gmra.mxu0 %v1736
        %v2013 = vpop.f32.mrf.mxu0
        %v2014 = vadd.f32 %v1965, %v2013
        %v2015 = vpop.f32.mrf.mxu0
        %v2016 = vadd.f32 %v1967, %v2015
        %2017 = vmatmul.bf16.gmra.mxu0 %v1738
        %v2018 = vpop.f32.mrf.mxu0
        %v2019 = vadd.f32 %v1970, %v2018
        %v2020 = vpop.f32.mrf.mxu0
        %v2021 = vadd.f32 %v1972, %v2020
        %2022 = vmatmul.bf16.gmra.mxu0 %v1740
        %v2023 = vpop.f32.mrf.mxu0
        %v2024 = vadd.f32 %v1975, %v2023
        %v2025 = vpop.f32.mrf.mxu0
        %v2026 = vadd.f32 %v1977, %v2025
        %2027 = vmatmul.bf16.gmra.mxu0 %v1742
        %v2028 = vpop.f32.mrf.mxu0
        %v2029 = vadd.f32 %v1980, %v2028
        %v2030 = vpop.f32.mrf.mxu0
        %v2031 = vadd.f32 %v1982, %v2030
        %2032 = vmatmul.bf16.gmra.mxu0 %v1744
        %v2033 = vpop.f32.mrf.mxu0
        %v2034 = vadd.f32 %v1985, %v2033
        %v2035 = vpop.f32.mrf.mxu0
        %v2036 = vadd.f32 %v1987, %v2035
        %2037 = vmatmul.bf16.gmra.mxu0 %v1746
        %v2038 = vpop.f32.mrf.mxu0
        %v2039 = vadd.f32 %v1990, %v2038
        %v2040 = vpop.f32.mrf.mxu0
        %v2041 = vadd.f32 %v1992, %v2040
        %2042 = vdwg.mxu0
        %2043 = vmatpush.bf16.msra.mxu0 %v1896
        %2044 = vmatpush.bf16.msra.mxu0 %v1894
        %2045 = vmatpush.bf16.msra.mxu0 %v1892
        %2046 = vmatpush.bf16.msra.mxu0 %v1890
        %2047 = vmatpush.bf16.msra.mxu0 %v1888
        %2048 = vmatpush.bf16.msra.mxu0 %v1886
        %2049 = vmatpush.bf16.msra.mxu0 %v1884
        %2050 = vmatpush.bf16.msra.mxu0 %v1882
        %2051 = vmatmul.bf16.gmra.mxu0 %v1731
        %v2052 = vpop.f32.mrf.mxu0
        %v2053 = vadd.f32 %v1782, %v2052
        %v2054 = vpop.f32.mrf.mxu0
        %v2055 = vadd.f32 %v1782, %v2054
        %2056 = vmatmul.bf16.gmra.mxu0 %v1733
        %v2057 = vpop.f32.mrf.mxu0
        %v2058 = vadd.f32 %v1782, %v2057
        %v2059 = vpop.f32.mrf.mxu0
        %v2060 = vadd.f32 %v1782, %v2059
        %2061 = vmatmul.bf16.gmra.mxu0 %v1735
        %v2062 = vpop.f32.mrf.mxu0
        %v2063 = vadd.f32 %v1782, %v2062
        %v2064 = vpop.f32.mrf.mxu0
        %v2065 = vadd.f32 %v1782, %v2064
        %2066 = vmatmul.bf16.gmra.mxu0 %v1737
        %v2067 = vpop.f32.mrf.mxu0
        %v2068 = vadd.f32 %v1782, %v2067
        %v2069 = vpop.f32.mrf.mxu0
        %v2070 = vadd.f32 %v1782, %v2069
        %2071 = vmatmul.bf16.gmra.mxu0 %v1739
        %v2072 = vpop.f32.mrf.mxu0
        %v2073 = vadd.f32 %v1782, %v2072
        %v2074 = vpop.f32.mrf.mxu0
        %v2075 = vadd.f32 %v1782, %v2074
        %2076 = vmatmul.bf16.gmra.mxu0 %v1741
        %v2077 = vpop.f32.mrf.mxu0
        %v2078 = vadd.f32 %v1782, %v2077
        %v2079 = vpop.f32.mrf.mxu0
        %v2080 = vadd.f32 %v1782, %v2079
        %2081 = vmatmul.bf16.gmra.mxu0 %v1743
        %v2082 = vpop.f32.mrf.mxu0
        %v2083 = vadd.f32 %v1782, %v2082
        %v2084 = vpop.f32.mrf.mxu0
        %v2085 = vadd.f32 %v1782, %v2084
        %2086 = vmatmul.bf16.gmra.mxu0 %v1745
        %v2087 = vpop.f32.mrf.mxu0
        %v2088 = vadd.f32 %v1782, %v2087
        %v2089 = vpop.f32.mrf.mxu0
        %v2090 = vadd.f32 %v1782, %v2089
        %2091 = vdwg.mxu0
        %2092 = vmatpush.bf16.msra.mxu0 %v1912
        %2093 = vmatpush.bf16.msra.mxu0 %v1910
        %2094 = vmatpush.bf16.msra.mxu0 %v1908
        %2095 = vmatpush.bf16.msra.mxu0 %v1906
        %2096 = vmatpush.bf16.msra.mxu0 %v1904
        %2097 = vmatpush.bf16.msra.mxu0 %v1902
        %2098 = vmatpush.bf16.msra.mxu0 %v1900
        %2099 = vmatpush.bf16.msra.mxu0 %v1898
        %2100 = vmatmul.bf16.gmra.mxu0 %v1732
        %v2101 = vpop.f32.mrf.mxu0
        %v2102 = vadd.f32 %v2053, %v2101
        %v2103 = vpop.f32.mrf.mxu0
        %v2104 = vadd.f32 %v2055, %v2103
        %2105 = vmatmul.bf16.gmra.mxu0 %v1734
        %v2106 = vpop.f32.mrf.mxu0
        %v2107 = vadd.f32 %v2058, %v2106
        %v2108 = vpop.f32.mrf.mxu0
        %v2109 = vadd.f32 %v2060, %v2108
        %2110 = vmatmul.bf16.gmra.mxu0 %v1736
        %v2111 = vpop.f32.mrf.mxu0
        %v2112 = vadd.f32 %v2063, %v2111
        %v2113 = vpop.f32.mrf.mxu0
        %v2114 = vadd.f32 %v2065, %v2113
        %2115 = vmatmul.bf16.gmra.mxu0 %v1738
        %v2116 = vpop.f32.mrf.mxu0
        %v2117 = vadd.f32 %v2068, %v2116
        %v2118 = vpop.f32.mrf.mxu0
        %v2119 = vadd.f32 %v2070, %v2118
        %2120 = vmatmul.bf16.gmra.mxu0 %v1740
        %v2121 = vpop.f32.mrf.mxu0
        %v2122 = vadd.f32 %v2073, %v2121
        %v2123 = vpop.f32.mrf.mxu0
        %v2124 = vadd.f32 %v2075, %v2123
        %2125 = vmatmul.bf16.gmra.mxu0 %v1742
        %v2126 = vpop.f32.mrf.mxu0
        %v2127 = vadd.f32 %v2078, %v2126
        %v2128 = vpop.f32.mrf.mxu0
        %v2129 = vadd.f32 %v2080, %v2128
        %2130 = vmatmul.bf16.gmra.mxu0 %v1744
        %v2131 = vpop.f32.mrf.mxu0
        %v2132 = vadd.f32 %v2083, %v2131
        %v2133 = vpop.f32.mrf.mxu0
        %v2134 = vadd.f32 %v2085, %v2133
        %2135 = vmatmul.bf16.gmra.mxu0 %v1746
        %v2136 = vpop.f32.mrf.mxu0
        %v2137 = vadd.f32 %v2088, %v2136
        %v2138 = vpop.f32.mrf.mxu0
        %v2139 = vadd.f32 %v2090, %v2138
        %2140 = vdwg.mxu0
        %v2141 = vmax.f32 %v2004, 0.0
        %v2142 = vmax.f32 %v2102, 0.0
        %v2143 = vmax.f32 %v2006, 0.0
        %v2144 = vmax.f32 %v2104, 0.0
        %v2145 = vmax.f32 %v2009, 0.0
        %v2146 = vmax.f32 %v2107, 0.0
        %v2147 = vmax.f32 %v2011, 0.0
        %v2148 = vmax.f32 %v2109, 0.0
        %v2149 = vmax.f32 %v2014, 0.0
        %v2150 = vmax.f32 %v2112, 0.0
        %v2151 = vmax.f32 %v2016, 0.0
        %v2152 = vmax.f32 %v2114, 0.0
        %v2153 = vmax.f32 %v2019, 0.0
        %v2154 = vmax.f32 %v2117, 0.0
        %v2155 = vmax.f32 %v2021, 0.0
        %v2156 = vmax.f32 %v2119, 0.0
        %v2157 = vmax.f32 %v2024, 0.0
        %v2158 = vmax.f32 %v2122, 0.0
        %v2159 = vmax.f32 %v2026, 0.0
        %v2160 = vmax.f32 %v2124, 0.0
        %v2161 = vmax.f32 %v2029, 0.0
        %v2162 = vmax.f32 %v2127, 0.0
        %v2163 = vmax.f32 %v2031, 0.0
        %v2164 = vmax.f32 %v2129, 0.0
        %v2165 = vmax.f32 %v2034, 0.0
        %v2166 = vmax.f32 %v2132, 0.0
        %v2167 = vmax.f32 %v2036, 0.0
        %v2168 = vmax.f32 %v2134, 0.0
        %v2169 = vmax.f32 %v2039, 0.0
        %v2170 = vmax.f32 %v2137, 0.0
        %v2171 = vmax.f32 %v2041, 0.0
        %v2172 = vmax.f32 %v2139, 0.0
        %v2173 = vpack.c.bf16 %v2143, %v2141
        %v2174 = vpack.c.bf16 %v2144, %v2142
        %v2175 = vpack.c.bf16 %v2147, %v2145
        %v2176 = vpack.c.bf16 %v2148, %v2146
        %v2177 = vpack.c.bf16 %v2151, %v2149
        %v2178 = vpack.c.bf16 %v2152, %v2150
        %v2179 = vpack.c.bf16 %v2155, %v2153
        %v2180 = vpack.c.bf16 %v2156, %v2154
        %v2181 = vpack.c.bf16 %v2159, %v2157
        %v2182 = vpack.c.bf16 %v2160, %v2158
        %v2183 = vpack.c.bf16 %v2163, %v2161
        %v2184 = vpack.c.bf16 %v2164, %v2162
        %v2185 = vpack.c.bf16 %v2167, %v2165
        %v2186 = vpack.c.bf16 %v2168, %v2166
        %v2187 = vpack.c.bf16 %v2171, %v2169
        %v2188 = vpack.c.bf16 %v2172, %v2170
        %v2189 = vld [vmem:[#allocation8] sm:$0xff]
        %v2190 = vld [vmem:[#allocation8 + $0x8] sm:$0xff]
        %v2191 = vld [vmem:[#allocation8 + $0x10] sm:$0xff]
        %v2192 = vld [vmem:[#allocation8 + $0x18] sm:$0xff]
        %v2193 = vld [vmem:[#allocation8 + $0x20] sm:$0xff]
        %v2194 = vld [vmem:[#allocation8 + $0x28] sm:$0xff]
        %v2195 = vld [vmem:[#allocation8 + $0x30] sm:$0xff]
        %v2196 = vld [vmem:[#allocation8 + $0x38] sm:$0xff]
        %v2197 = vld [vmem:[#allocation8 + $0x40] sm:$0xff]
        %v2198 = vld [vmem:[#allocation8 + $0x48] sm:$0xff]
        %v2199 = vld [vmem:[#allocation8 + $0x50] sm:$0xff]
        %v2200 = vld [vmem:[#allocation8 + $0x58] sm:$0xff]
        %v2201 = vld [vmem:[#allocation8 + $0x60] sm:$0xff]
        %v2202 = vld [vmem:[#allocation8 + $0x68] sm:$0xff]
        %v2203 = vld [vmem:[#allocation8 + $0x70] sm:$0xff]
        %v2204 = vld [vmem:[#allocation8 + $0x78] sm:$0xff]
        %v2205 = vld [vmem:[#allocation8 + $0x80] sm:$0xff]
        %v2206 = vld [vmem:[#allocation8 + $0x88] sm:$0xff]
        %v2207 = vld [vmem:[#allocation8 + $0x90] sm:$0xff]
        %v2208 = vld [vmem:[#allocation8 + $0x98] sm:$0xff]
        %v2209 = vld [vmem:[#allocation8 + $0xa0] sm:$0xff]
        %v2210 = vld [vmem:[#allocation8 + $0xa8] sm:$0xff]
        %v2211 = vld [vmem:[#allocation8 + $0xb0] sm:$0xff]
        %v2212 = vld [vmem:[#allocation8 + $0xb8] sm:$0xff]
        %v2213 = vld [vmem:[#allocation8 + $0xc0] sm:$0xff]
        %v2214 = vld [vmem:[#allocation8 + $0xc8] sm:$0xff]
        %v2215 = vld [vmem:[#allocation8 + $0xd0] sm:$0xff]
        %v2216 = vld [vmem:[#allocation8 + $0xd8] sm:$0xff]
        %v2217 = vld [vmem:[#allocation8 + $0xe0] sm:$0xff]
        %v2218 = vld [vmem:[#allocation8 + $0xe8] sm:$0xff]
        %v2219 = vld [vmem:[#allocation8 + $0xf0] sm:$0xff]
        %v2220 = vld [vmem:[#allocation8 + $0xf8] sm:$0xff]
        %v2221 = vld [vmem:[%s10] sm:$0x3]
        %v2223 = vperm.slane %v2221, 0
        %v2224 = vperm.slane %v2221, 1
        %v2259 = vunpack.c.l.b16 %v2189
        %v2260 = vunpack.c.h.b16 %v2189
        %v2261 = vunpack.c.l.b16 %v2190
        %v2262 = vunpack.c.h.b16 %v2190
        %v2263 = vunpack.c.l.b16 %v2191
        %v2264 = vunpack.c.h.b16 %v2191
        %v2265 = vunpack.c.l.b16 %v2192
        %v2266 = vunpack.c.h.b16 %v2192
        %v2267 = vunpack.c.l.b16 %v2193
        %v2268 = vunpack.c.h.b16 %v2193
        %v2269 = vunpack.c.l.b16 %v2194
        %v2270 = vunpack.c.h.b16 %v2194
        %v2271 = vunpack.c.l.b16 %v2195
        %v2272 = vunpack.c.h.b16 %v2195
        %v2273 = vunpack.c.l.b16 %v2196
        %v2274 = vunpack.c.h.b16 %v2196
        %v2275 = vunpack.c.l.b16 %v2197
        %v2276 = vunpack.c.h.b16 %v2197
        %v2277 = vunpack.c.l.b16 %v2198
        %v2278 = vunpack.c.h.b16 %v2198
        %v2279 = vunpack.c.l.b16 %v2199
        %v2280 = vunpack.c.h.b16 %v2199
        %v2281 = vunpack.c.l.b16 %v2200
        %v2282 = vunpack.c.h.b16 %v2200
        %v2283 = vunpack.c.l.b16 %v2201
        %v2284 = vunpack.c.h.b16 %v2201
        %v2285 = vunpack.c.l.b16 %v2202
        %v2286 = vunpack.c.h.b16 %v2202
        %v2287 = vunpack.c.l.b16 %v2203
        %v2288 = vunpack.c.h.b16 %v2203
        %v2289 = vunpack.c.l.b16 %v2204
        %v2290 = vunpack.c.h.b16 %v2204
        %v2291 = vunpack.c.l.b16 %v2205
        %v2292 = vunpack.c.h.b16 %v2205
        %v2293 = vunpack.c.l.b16 %v2206
        %v2294 = vunpack.c.h.b16 %v2206
        %v2295 = vunpack.c.l.b16 %v2207
        %v2296 = vunpack.c.h.b16 %v2207
        %v2297 = vunpack.c.l.b16 %v2208
        %v2298 = vunpack.c.h.b16 %v2208
        %v2299 = vunpack.c.l.b16 %v2209
        %v2300 = vunpack.c.h.b16 %v2209
        %v2301 = vunpack.c.l.b16 %v2210
        %v2302 = vunpack.c.h.b16 %v2210
        %v2303 = vunpack.c.l.b16 %v2211
        %v2304 = vunpack.c.h.b16 %v2211
        %v2305 = vunpack.c.l.b16 %v2212
        %v2306 = vunpack.c.h.b16 %v2212
        %v2307 = vunpack.c.l.b16 %v2213
        %v2308 = vunpack.c.h.b16 %v2213
        %v2309 = vunpack.c.l.b16 %v2214
        %v2310 = vunpack.c.h.b16 %v2214
        %v2311 = vunpack.c.l.b16 %v2215
        %v2312 = vunpack.c.h.b16 %v2215
        %v2313 = vunpack.c.l.b16 %v2216
        %v2314 = vunpack.c.h.b16 %v2216
        %v2315 = vunpack.c.l.b16 %v2217
        %v2316 = vunpack.c.h.b16 %v2217
        %v2317 = vunpack.c.l.b16 %v2218
        %v2318 = vunpack.c.h.b16 %v2218
        %v2319 = vunpack.c.l.b16 %v2219
        %v2320 = vunpack.c.h.b16 %v2219
        %v2321 = vunpack.c.l.b16 %v2220
        %v2322 = vunpack.c.h.b16 %v2220
        %v2323 = vpack.c.b16 %v2261, %v2259
        %v2324 = vpack.c.b16 %v2262, %v2260
        %v2325 = vpack.c.b16 %v2265, %v2263
        %v2326 = vpack.c.b16 %v2266, %v2264
        %v2327 = vpack.c.b16 %v2269, %v2267
        %v2328 = vpack.c.b16 %v2270, %v2268
        %v2329 = vpack.c.b16 %v2273, %v2271
        %v2330 = vpack.c.b16 %v2274, %v2272
        %v2331 = vpack.c.b16 %v2277, %v2275
        %v2332 = vpack.c.b16 %v2278, %v2276
        %v2333 = vpack.c.b16 %v2281, %v2279
        %v2334 = vpack.c.b16 %v2282, %v2280
        %v2335 = vpack.c.b16 %v2285, %v2283
        %v2336 = vpack.c.b16 %v2286, %v2284
        %v2337 = vpack.c.b16 %v2289, %v2287
        %v2338 = vpack.c.b16 %v2290, %v2288
        %v2339 = vpack.c.b16 %v2293, %v2291
        %v2340 = vpack.c.b16 %v2294, %v2292
        %v2341 = vpack.c.b16 %v2297, %v2295
        %v2342 = vpack.c.b16 %v2298, %v2296
        %v2343 = vpack.c.b16 %v2301, %v2299
        %v2344 = vpack.c.b16 %v2302, %v2300
        %v2345 = vpack.c.b16 %v2305, %v2303
        %v2346 = vpack.c.b16 %v2306, %v2304
        %v2347 = vpack.c.b16 %v2309, %v2307
        %v2348 = vpack.c.b16 %v2310, %v2308
        %v2349 = vpack.c.b16 %v2313, %v2311
        %v2350 = vpack.c.b16 %v2314, %v2312
        %v2351 = vpack.c.b16 %v2317, %v2315
        %v2352 = vpack.c.b16 %v2318, %v2316
        %v2353 = vpack.c.b16 %v2321, %v2319
        %v2354 = vpack.c.b16 %v2322, %v2320
        %2387 = vmatpush.bf16.msra.mxu0 %v2337
        %2388 = vmatpush.bf16.msra.mxu0 %v2335
        %2389 = vmatpush.bf16.msra.mxu0 %v2333
        %2390 = vmatpush.bf16.msra.mxu0 %v2331
        %2391 = vmatpush.bf16.msra.mxu0 %v2329
        %2392 = vmatpush.bf16.msra.mxu0 %v2327
        %2393 = vmatpush.bf16.msra.mxu0 %v2325
        %2394 = vmatpush.bf16.msra.mxu0 %v2323
        %2395 = vmatmul.bf16.gmra.mxu0 %v2173
        %v2396 = vpop.f32.mrf.mxu0
        %v2397 = vadd.f32 %v2223, %v2396
        %v2398 = vpop.f32.mrf.mxu0
        %v2399 = vadd.f32 %v2223, %v2398
        %2400 = vmatmul.bf16.gmra.mxu0 %v2175
        %v2401 = vpop.f32.mrf.mxu0
        %v2402 = vadd.f32 %v2223, %v2401
        %v2403 = vpop.f32.mrf.mxu0
        %v2404 = vadd.f32 %v2223, %v2403
        %2405 = vmatmul.bf16.gmra.mxu0 %v2177
        %v2406 = vpop.f32.mrf.mxu0
        %v2407 = vadd.f32 %v2223, %v2406
        %v2408 = vpop.f32.mrf.mxu0
        %v2409 = vadd.f32 %v2223, %v2408
        %2410 = vmatmul.bf16.gmra.mxu0 %v2179
        %v2411 = vpop.f32.mrf.mxu0
        %v2412 = vadd.f32 %v2223, %v2411
        %v2413 = vpop.f32.mrf.mxu0
        %v2414 = vadd.f32 %v2223, %v2413
        %2415 = vmatmul.bf16.gmra.mxu0 %v2181
        %v2416 = vpop.f32.mrf.mxu0
        %v2417 = vadd.f32 %v2223, %v2416
        %v2418 = vpop.f32.mrf.mxu0
        %v2419 = vadd.f32 %v2223, %v2418
        %2420 = vmatmul.bf16.gmra.mxu0 %v2183
        %v2421 = vpop.f32.mrf.mxu0
        %v2422 = vadd.f32 %v2223, %v2421
        %v2423 = vpop.f32.mrf.mxu0
        %v2424 = vadd.f32 %v2223, %v2423
        %2425 = vmatmul.bf16.gmra.mxu0 %v2185
        %v2426 = vpop.f32.mrf.mxu0
        %v2427 = vadd.f32 %v2223, %v2426
        %v2428 = vpop.f32.mrf.mxu0
        %v2429 = vadd.f32 %v2223, %v2428
        %2430 = vmatmul.bf16.gmra.mxu0 %v2187
        %v2431 = vpop.f32.mrf.mxu0
        %v2432 = vadd.f32 %v2223, %v2431
        %v2433 = vpop.f32.mrf.mxu0
        %v2434 = vadd.f32 %v2223, %v2433
        %2435 = vdwg.mxu0
        %2436 = vmatpush.bf16.msra.mxu0 %v2353
        %2437 = vmatpush.bf16.msra.mxu0 %v2351
        %2438 = vmatpush.bf16.msra.mxu0 %v2349
        %2439 = vmatpush.bf16.msra.mxu0 %v2347
        %2440 = vmatpush.bf16.msra.mxu0 %v2345
        %2441 = vmatpush.bf16.msra.mxu0 %v2343
        %2442 = vmatpush.bf16.msra.mxu0 %v2341
        %2443 = vmatpush.bf16.msra.mxu0 %v2339
        %2444 = vmatmul.bf16.gmra.mxu0 %v2174
        %v2445 = vpop.f32.mrf.mxu0
        %v2446 = vadd.f32 %v2397, %v2445
        %v2447 = vpop.f32.mrf.mxu0
        %v2448 = vadd.f32 %v2399, %v2447
        %2449 = vmatmul.bf16.gmra.mxu0 %v2176
        %v2450 = vpop.f32.mrf.mxu0
        %v2451 = vadd.f32 %v2402, %v2450
        %v2452 = vpop.f32.mrf.mxu0
        %v2453 = vadd.f32 %v2404, %v2452
        %2454 = vmatmul.bf16.gmra.mxu0 %v2178
        %v2455 = vpop.f32.mrf.mxu0
        %v2456 = vadd.f32 %v2407, %v2455
        %v2457 = vpop.f32.mrf.mxu0
        %v2458 = vadd.f32 %v2409, %v2457
        %2459 = vmatmul.bf16.gmra.mxu0 %v2180
        %v2460 = vpop.f32.mrf.mxu0
        %v2461 = vadd.f32 %v2412, %v2460
        %v2462 = vpop.f32.mrf.mxu0
        %v2463 = vadd.f32 %v2414, %v2462
        %2464 = vmatmul.bf16.gmra.mxu0 %v2182
        %v2465 = vpop.f32.mrf.mxu0
        %v2466 = vadd.f32 %v2417, %v2465
        %v2467 = vpop.f32.mrf.mxu0
        %v2468 = vadd.f32 %v2419, %v2467
        %2469 = vmatmul.bf16.gmra.mxu0 %v2184
        %v2470 = vpop.f32.mrf.mxu0
        %v2471 = vadd.f32 %v2422, %v2470
        %v2472 = vpop.f32.mrf.mxu0
        %v2473 = vadd.f32 %v2424, %v2472
        %2474 = vmatmul.bf16.gmra.mxu0 %v2186
        %v2475 = vpop.f32.mrf.mxu0
        %v2476 = vadd.f32 %v2427, %v2475
        %v2477 = vpop.f32.mrf.mxu0
        %v2478 = vadd.f32 %v2429, %v2477
        %2479 = vmatmul.bf16.gmra.mxu0 %v2188
        %v2480 = vpop.f32.mrf.mxu0
        %v2481 = vadd.f32 %v2432, %v2480
        %v2482 = vpop.f32.mrf.mxu0
        %v2483 = vadd.f32 %v2434, %v2482
        %2484 = vdwg.mxu0
        %2485 = vmatpush.bf16.msra.mxu0 %v2338
        %2486 = vmatpush.bf16.msra.mxu0 %v2336
        %2487 = vmatpush.bf16.msra.mxu0 %v2334
        %2488 = vmatpush.bf16.msra.mxu0 %v2332
        %2489 = vmatpush.bf16.msra.mxu0 %v2330
        %2490 = vmatpush.bf16.msra.mxu0 %v2328
        %2491 = vmatpush.bf16.msra.mxu0 %v2326
        %2492 = vmatpush.bf16.msra.mxu0 %v2324
        %2493 = vmatmul.bf16.gmra.mxu0 %v2173
        %v2494 = vpop.f32.mrf.mxu0
        %v2495 = vadd.f32 %v2224, %v2494
        %v2496 = vpop.f32.mrf.mxu0
        %v2497 = vadd.f32 %v2224, %v2496
        %2498 = vmatmul.bf16.gmra.mxu0 %v2175
        %v2499 = vpop.f32.mrf.mxu0
        %v2500 = vadd.f32 %v2224, %v2499
        %v2501 = vpop.f32.mrf.mxu0
        %v2502 = vadd.f32 %v2224, %v2501
        %2503 = vmatmul.bf16.gmra.mxu0 %v2177
        %v2504 = vpop.f32.mrf.mxu0
        %v2505 = vadd.f32 %v2224, %v2504
        %v2506 = vpop.f32.mrf.mxu0
        %v2507 = vadd.f32 %v2224, %v2506
        %2508 = vmatmul.bf16.gmra.mxu0 %v2179
        %v2509 = vpop.f32.mrf.mxu0
        %v2510 = vadd.f32 %v2224, %v2509
        %v2511 = vpop.f32.mrf.mxu0
        %v2512 = vadd.f32 %v2224, %v2511
        %2513 = vmatmul.bf16.gmra.mxu0 %v2181
        %v2514 = vpop.f32.mrf.mxu0
        %v2515 = vadd.f32 %v2224, %v2514
        %v2516 = vpop.f32.mrf.mxu0
        %v2517 = vadd.f32 %v2224, %v2516
        %2518 = vmatmul.bf16.gmra.mxu0 %v2183
        %v2519 = vpop.f32.mrf.mxu0
        %v2520 = vadd.f32 %v2224, %v2519
        %v2521 = vpop.f32.mrf.mxu0
        %v2522 = vadd.f32 %v2224, %v2521
        %2523 = vmatmul.bf16.gmra.mxu0 %v2185
        %v2524 = vpop.f32.mrf.mxu0
        %v2525 = vadd.f32 %v2224, %v2524
        %v2526 = vpop.f32.mrf.mxu0
        %v2527 = vadd.f32 %v2224, %v2526
        %2528 = vmatmul.bf16.gmra.mxu0 %v2187
        %v2529 = vpop.f32.mrf.mxu0
        %v2530 = vadd.f32 %v2224, %v2529
        %v2531 = vpop.f32.mrf.mxu0
        %v2532 = vadd.f32 %v2224, %v2531
        %2533 = vdwg.mxu0
        %2534 = vmatpush.bf16.msra.mxu0 %v2354
        %2535 = vmatpush.bf16.msra.mxu0 %v2352
        %2536 = vmatpush.bf16.msra.mxu0 %v2350
        %2537 = vmatpush.bf16.msra.mxu0 %v2348
        %2538 = vmatpush.bf16.msra.mxu0 %v2346
        %2539 = vmatpush.bf16.msra.mxu0 %v2344
        %2540 = vmatpush.bf16.msra.mxu0 %v2342
        %2541 = vmatpush.bf16.msra.mxu0 %v2340
        %2542 = vmatmul.bf16.gmra.mxu0 %v2174
        %v2543 = vpop.f32.mrf.mxu0
        %v2544 = vadd.f32 %v2495, %v2543
        %v2545 = vpop.f32.mrf.mxu0
        %v2546 = vadd.f32 %v2497, %v2545
        %2547 = vmatmul.bf16.gmra.mxu0 %v2176
        %v2548 = vpop.f32.mrf.mxu0
        %v2549 = vadd.f32 %v2500, %v2548
        %v2550 = vpop.f32.mrf.mxu0
        %v2551 = vadd.f32 %v2502, %v2550
        %2552 = vmatmul.bf16.gmra.mxu0 %v2178
        %v2553 = vpop.f32.mrf.mxu0
        %v2554 = vadd.f32 %v2505, %v2553
        %v2555 = vpop.f32.mrf.mxu0
        %v2556 = vadd.f32 %v2507, %v2555
        %2557 = vmatmul.bf16.gmra.mxu0 %v2180
        %v2558 = vpop.f32.mrf.mxu0
        %v2559 = vadd.f32 %v2510, %v2558
        %v2560 = vpop.f32.mrf.mxu0
        %v2561 = vadd.f32 %v2512, %v2560
        %2562 = vmatmul.bf16.gmra.mxu0 %v2182
        %v2563 = vpop.f32.mrf.mxu0
        %v2564 = vadd.f32 %v2515, %v2563
        %v2565 = vpop.f32.mrf.mxu0
        %v2566 = vadd.f32 %v2517, %v2565
        %2567 = vmatmul.bf16.gmra.mxu0 %v2184
        %v2568 = vpop.f32.mrf.mxu0
        %v2569 = vadd.f32 %v2520, %v2568
        %v2570 = vpop.f32.mrf.mxu0
        %v2571 = vadd.f32 %v2522, %v2570
        %2572 = vmatmul.bf16.gmra.mxu0 %v2186
        %v2573 = vpop.f32.mrf.mxu0
        %v2574 = vadd.f32 %v2525, %v2573
        %v2575 = vpop.f32.mrf.mxu0
        %v2576 = vadd.f32 %v2527, %v2575
        %2577 = vmatmul.bf16.gmra.mxu0 %v2188
        %v2578 = vpop.f32.mrf.mxu0
        %v2579 = vadd.f32 %v2530, %v2578
        %v2580 = vpop.f32.mrf.mxu0
        %v2581 = vadd.f32 %v2532, %v2580
        %2582 = vdwg.mxu0
        %v2583 = vmax.f32 %v2446, 0.0
        %v2584 = vmax.f32 %v2544, 0.0
        %v2585 = vmax.f32 %v2448, 0.0
        %v2586 = vmax.f32 %v2546, 0.0
        %v2587 = vmax.f32 %v2451, 0.0
        %v2588 = vmax.f32 %v2549, 0.0
        %v2589 = vmax.f32 %v2453, 0.0
        %v2590 = vmax.f32 %v2551, 0.0
        %v2591 = vmax.f32 %v2456, 0.0
        %v2592 = vmax.f32 %v2554, 0.0
        %v2593 = vmax.f32 %v2458, 0.0
        %v2594 = vmax.f32 %v2556, 0.0
        %v2595 = vmax.f32 %v2461, 0.0
        %v2596 = vmax.f32 %v2559, 0.0
        %v2597 = vmax.f32 %v2463, 0.0
        %v2598 = vmax.f32 %v2561, 0.0
        %v2599 = vmax.f32 %v2466, 0.0
        %v2600 = vmax.f32 %v2564, 0.0
        %v2601 = vmax.f32 %v2468, 0.0
        %v2602 = vmax.f32 %v2566, 0.0
        %v2603 = vmax.f32 %v2471, 0.0
        %v2604 = vmax.f32 %v2569, 0.0
        %v2605 = vmax.f32 %v2473, 0.0
        %v2606 = vmax.f32 %v2571, 0.0
        %v2607 = vmax.f32 %v2476, 0.0
        %v2608 = vmax.f32 %v2574, 0.0
        %v2609 = vmax.f32 %v2478, 0.0
        %v2610 = vmax.f32 %v2576, 0.0
        %v2611 = vmax.f32 %v2481, 0.0
        %v2612 = vmax.f32 %v2579, 0.0
        %v2613 = vmax.f32 %v2483, 0.0
        %v2614 = vmax.f32 %v2581, 0.0
        %v2615 = vpack.c.bf16 %v2585, %v2583
        %v2616 = vpack.c.bf16 %v2586, %v2584
        %v2617 = vpack.c.bf16 %v2589, %v2587
        %v2618 = vpack.c.bf16 %v2590, %v2588
        %v2619 = vpack.c.bf16 %v2593, %v2591
        %v2620 = vpack.c.bf16 %v2594, %v2592
        %v2621 = vpack.c.bf16 %v2597, %v2595
        %v2622 = vpack.c.bf16 %v2598, %v2596
        %v2623 = vpack.c.bf16 %v2601, %v2599
        %v2624 = vpack.c.bf16 %v2602, %v2600
        %v2625 = vpack.c.bf16 %v2605, %v2603
        %v2626 = vpack.c.bf16 %v2606, %v2604
        %v2627 = vpack.c.bf16 %v2609, %v2607
        %v2628 = vpack.c.bf16 %v2610, %v2608
        %v2629 = vpack.c.bf16 %v2613, %v2611
        %v2630 = vpack.c.bf16 %v2614, %v2612
        %v2631 = vld [vmem:[%s11] sm:$0xf]
        %v2632 = vld [vmem:[%s11 + $0x4] sm:$0xf]
        %v2633 = vld [vmem:[%s11 + $0x8] sm:$0xf]
        %v2634 = vld [vmem:[%s11 + $0xc] sm:$0xf]
        %v2635 = vld [vmem:[%s11 + $0x10] sm:$0xf]
        %v2636 = vld [vmem:[%s11 + $0x14] sm:$0xf]
        %v2637 = vld [vmem:[%s11 + $0x18] sm:$0xf]
        %v2638 = vld [vmem:[%s11 + $0x1c] sm:$0xf]
        %v2639 = vld [vmem:[%s11 + $0x20] sm:$0xf]
        %v2640 = vld [vmem:[%s11 + $0x24] sm:$0xf]
        %v2641 = vld [vmem:[%s11 + $0x28] sm:$0xf]
        %v2642 = vld [vmem:[%s11 + $0x2c] sm:$0xf]
        %v2643 = vld [vmem:[%s11 + $0x30] sm:$0xf]
        %v2644 = vld [vmem:[%s11 + $0x34] sm:$0xf]
        %v2645 = vld [vmem:[%s11 + $0x38] sm:$0xf]
        %v2646 = vld [vmem:[%s11 + $0x3c] sm:$0xf]
        %v2647 = vld [vmem:[%s11 + $0x40] sm:$0xf]
        %v2648 = vld [vmem:[%s11 + $0x44] sm:$0xf]
        %v2649 = vld [vmem:[%s11 + $0x48] sm:$0xf]
        %v2650 = vld [vmem:[%s11 + $0x4c] sm:$0xf]
        %v2651 = vld [vmem:[%s11 + $0x50] sm:$0xf]
        %v2652 = vld [vmem:[%s11 + $0x54] sm:$0xf]
        %v2653 = vld [vmem:[%s11 + $0x58] sm:$0xf]
        %v2654 = vld [vmem:[%s11 + $0x5c] sm:$0xf]
        %v2655 = vld [vmem:[%s11 + $0x60] sm:$0xf]
        %v2656 = vld [vmem:[%s11 + $0x64] sm:$0xf]
        %v2657 = vld [vmem:[%s11 + $0x68] sm:$0xf]
        %v2658 = vld [vmem:[%s11 + $0x6c] sm:$0xf]
        %v2659 = vld [vmem:[%s11 + $0x70] sm:$0xf]
        %v2660 = vld [vmem:[%s11 + $0x74] sm:$0xf]
        %v2661 = vld [vmem:[%s11 + $0x78] sm:$0xf]
        %v2662 = vld [vmem:[%s11 + $0x7c] sm:$0xf]
        %v2663 = vld [vmem:[%s12] sm:$0x1]
        %v2665 = vperm.slane %v2663, 0
        %v2699 = vunpack.c.l.b16 %v2631
        %v2700 = vunpack.c.l.b16 %v2632
        %v2701 = vunpack.c.l.b16 %v2633
        %v2702 = vunpack.c.l.b16 %v2634
        %v2703 = vunpack.c.l.b16 %v2635
        %v2704 = vunpack.c.l.b16 %v2636
        %v2705 = vunpack.c.l.b16 %v2637
        %v2706 = vunpack.c.l.b16 %v2638
        %v2707 = vunpack.c.l.b16 %v2639
        %v2708 = vunpack.c.l.b16 %v2640
        %v2709 = vunpack.c.l.b16 %v2641
        %v2710 = vunpack.c.l.b16 %v2642
        %v2711 = vunpack.c.l.b16 %v2643
        %v2712 = vunpack.c.l.b16 %v2644
        %v2713 = vunpack.c.l.b16 %v2645
        %v2714 = vunpack.c.l.b16 %v2646
        %v2715 = vunpack.c.l.b16 %v2647
        %v2716 = vunpack.c.l.b16 %v2648
        %v2717 = vunpack.c.l.b16 %v2649
        %v2718 = vunpack.c.l.b16 %v2650
        %v2719 = vunpack.c.l.b16 %v2651
        %v2720 = vunpack.c.l.b16 %v2652
        %v2721 = vunpack.c.l.b16 %v2653
        %v2722 = vunpack.c.l.b16 %v2654
        %v2723 = vunpack.c.l.b16 %v2655
        %v2724 = vunpack.c.l.b16 %v2656
        %v2725 = vunpack.c.l.b16 %v2657
        %v2726 = vunpack.c.l.b16 %v2658
        %v2727 = vunpack.c.l.b16 %v2659
        %v2728 = vunpack.c.l.b16 %v2660
        %v2729 = vunpack.c.l.b16 %v2661
        %v2730 = vunpack.c.l.b16 %v2662
        %v2731 = vpack.c.b16 %v2700, %v2699
        %v2732 = vpack.c.b16 %v2702, %v2701
        %v2733 = vpack.c.b16 %v2704, %v2703
        %v2734 = vpack.c.b16 %v2706, %v2705
        %v2735 = vpack.c.b16 %v2708, %v2707
        %v2736 = vpack.c.b16 %v2710, %v2709
        %v2737 = vpack.c.b16 %v2712, %v2711
        %v2738 = vpack.c.b16 %v2714, %v2713
        %v2739 = vpack.c.b16 %v2716, %v2715
        %v2740 = vpack.c.b16 %v2718, %v2717
        %v2741 = vpack.c.b16 %v2720, %v2719
        %v2742 = vpack.c.b16 %v2722, %v2721
        %v2743 = vpack.c.b16 %v2724, %v2723
        %v2744 = vpack.c.b16 %v2726, %v2725
        %v2745 = vpack.c.b16 %v2728, %v2727
        %v2746 = vpack.c.b16 %v2730, %v2729
        %2763 = vmatpush.bf16.msra.mxu0 %v2738
        %2764 = vmatpush.bf16.msra.mxu0 %v2737
        %2765 = vmatpush.bf16.msra.mxu0 %v2736
        %2766 = vmatpush.bf16.msra.mxu0 %v2735
        %2767 = vmatpush.bf16.msra.mxu0 %v2734
        %2768 = vmatpush.bf16.msra.mxu0 %v2733
        %2769 = vmatpush.bf16.msra.mxu0 %v2732
        %2770 = vmatpush.bf16.msra.mxu0 %v2731
        %2771 = vmatmul.bf16.gmra.mxu0 %v2615
        %v2772 = vpop.f32.mrf.mxu0
        %v2773 = vadd.f32 %v2665, %v2772
        %v2774 = vpop.f32.mrf.mxu0
        %v2775 = vadd.f32 %v2665, %v2774
        %2776 = vmatmul.bf16.gmra.mxu0 %v2617
        %v2777 = vpop.f32.mrf.mxu0
        %v2778 = vadd.f32 %v2665, %v2777
        %v2779 = vpop.f32.mrf.mxu0
        %v2780 = vadd.f32 %v2665, %v2779
        %2781 = vmatmul.bf16.gmra.mxu0 %v2619
        %v2782 = vpop.f32.mrf.mxu0
        %v2783 = vadd.f32 %v2665, %v2782
        %v2784 = vpop.f32.mrf.mxu0
        %v2785 = vadd.f32 %v2665, %v2784
        %2786 = vmatmul.bf16.gmra.mxu0 %v2621
        %v2787 = vpop.f32.mrf.mxu0
        %v2788 = vadd.f32 %v2665, %v2787
        %v2789 = vpop.f32.mrf.mxu0
        %v2790 = vadd.f32 %v2665, %v2789
        %2791 = vmatmul.bf16.gmra.mxu0 %v2623
        %v2792 = vpop.f32.mrf.mxu0
        %v2793 = vadd.f32 %v2665, %v2792
        %v2794 = vpop.f32.mrf.mxu0
        %v2795 = vadd.f32 %v2665, %v2794
        %2796 = vmatmul.bf16.gmra.mxu0 %v2625
        %v2797 = vpop.f32.mrf.mxu0
        %v2798 = vadd.f32 %v2665, %v2797
        %v2799 = vpop.f32.mrf.mxu0
        %v2800 = vadd.f32 %v2665, %v2799
        %2801 = vmatmul.bf16.gmra.mxu0 %v2627
        %v2802 = vpop.f32.mrf.mxu0
        %v2803 = vadd.f32 %v2665, %v2802
        %v2804 = vpop.f32.mrf.mxu0
        %v2805 = vadd.f32 %v2665, %v2804
        %2806 = vmatmul.bf16.gmra.mxu0 %v2629
        %v2807 = vpop.f32.mrf.mxu0
        %v2808 = vadd.f32 %v2665, %v2807
        %v2809 = vpop.f32.mrf.mxu0
        %v2810 = vadd.f32 %v2665, %v2809
        %2811 = vdwg.mxu0
        %2812 = vmatpush.bf16.msra.mxu0 %v2746
        %2813 = vmatpush.bf16.msra.mxu0 %v2745
        %2814 = vmatpush.bf16.msra.mxu0 %v2744
        %2815 = vmatpush.bf16.msra.mxu0 %v2743
        %2816 = vmatpush.bf16.msra.mxu0 %v2742
        %2817 = vmatpush.bf16.msra.mxu0 %v2741
        %2818 = vmatpush.bf16.msra.mxu0 %v2740
        %2819 = vmatpush.bf16.msra.mxu0 %v2739
        %2820 = vmatmul.bf16.gmra.mxu0 %v2616
        %v2821 = vpop.f32.mrf.mxu0
        %v2822 = vadd.f32 %v2773, %v2821
        %v2823 = vpop.f32.mrf.mxu0
        %v2824 = vadd.f32 %v2775, %v2823
        %2825 = vmatmul.bf16.gmra.mxu0 %v2618
        %v2826 = vpop.f32.mrf.mxu0
        %v2827 = vadd.f32 %v2778, %v2826
        %v2828 = vpop.f32.mrf.mxu0
        %v2829 = vadd.f32 %v2780, %v2828
        %2830 = vmatmul.bf16.gmra.mxu0 %v2620
        %v2831 = vpop.f32.mrf.mxu0
        %v2832 = vadd.f32 %v2783, %v2831
        %v2833 = vpop.f32.mrf.mxu0
        %v2834 = vadd.f32 %v2785, %v2833
        %2835 = vmatmul.bf16.gmra.mxu0 %v2622
        %v2836 = vpop.f32.mrf.mxu0
        %v2837 = vadd.f32 %v2788, %v2836
        %v2838 = vpop.f32.mrf.mxu0
        %v2839 = vadd.f32 %v2790, %v2838
        %2840 = vmatmul.bf16.gmra.mxu0 %v2624
        %v2841 = vpop.f32.mrf.mxu0
        %v2842 = vadd.f32 %v2793, %v2841
        %v2843 = vpop.f32.mrf.mxu0
        %v2844 = vadd.f32 %v2795, %v2843
        %2845 = vmatmul.bf16.gmra.mxu0 %v2626
        %v2846 = vpop.f32.mrf.mxu0
        %v2847 = vadd.f32 %v2798, %v2846
        %v2848 = vpop.f32.mrf.mxu0
        %v2849 = vadd.f32 %v2800, %v2848
        %2850 = vmatmul.bf16.gmra.mxu0 %v2628
        %v2851 = vpop.f32.mrf.mxu0
        %v2852 = vadd.f32 %v2803, %v2851
        %v2853 = vpop.f32.mrf.mxu0
        %v2854 = vadd.f32 %v2805, %v2853
        %2855 = vmatmul.bf16.gmra.mxu0 %v2630
        %v2856 = vpop.f32.mrf.mxu0
        %v2857 = vadd.f32 %v2808, %v2856
        %v2858 = vpop.f32.mrf.mxu0
        %v2859 = vadd.f32 %v2810, %v2858
        %2860 = vdwg.mxu0
        %2861 = vst [vmem:[%s499] sm:$0xff] %v2822
        %2862 = vst [vmem:[%s499 + $0x8] sm:$0xff] %v2824
        %2863 = vst [vmem:[%s499 + $0x10] sm:$0xff] %v2827
        %2864 = vst [vmem:[%s499 + $0x18] sm:$0xff] %v2829
        %2865 = vst [vmem:[%s499 + $0x20] sm:$0xff] %v2832
        %2866 = vst [vmem:[%s499 + $0x28] sm:$0xff] %v2834
        %2867 = vst [vmem:[%s499 + $0x30] sm:$0xff] %v2837
        %2868 = vst [vmem:[%s499 + $0x38] sm:$0xff] %v2839
        %2869 = vst [vmem:[%s499 + $0x40] sm:$0xff] %v2842
        %2870 = vst [vmem:[%s499 + $0x48] sm:$0xff] %v2844
        %2871 = vst [vmem:[%s499 + $0x50] sm:$0xff] %v2847
        %2872 = vst [vmem:[%s499 + $0x58] sm:$0xff] %v2849
        %2873 = vst [vmem:[%s499 + $0x60] sm:$0xff] %v2852
        %2874 = vst [vmem:[%s499 + $0x68] sm:$0xff] %v2854
        %2875 = vst [vmem:[%s499 + $0x70] sm:$0xff] %v2857
        %2876 = vst [vmem:[%s499 + $0x78] sm:$0xff] %v2859
        %s2877 = sand.u32 %s316, 1
        %s2878 = scalar_lea.sflag [#allocation4], %s2877
        %s2879 = sand.u32 %s316, 1
        %s2880 = smul.addr %s2879, 128
        %s2881 = scalar_lea.vmem [#allocation10], %s2880
        // Predicated region
        $region89: #{tpu_custom_call.1} parent=71 // pred_check
          %p2882 = pneg %p326
        $region90: #{tpu_custom_call.1} parent=71 // pred_check_branch
          %2884 = sbr.rel (%p2882) target = $region92
        $region91: #{tpu_custom_call.1} parent=71 // pred_region
          %s2885 = smul.u32 16, %s30
          %2887 = vsyncadd %s2878, 0
          %s2888 = smul.addr %s2885, 8
          %s2889 = scalar_lea.hbm %s13, %s2888
          %s2890 = sshll.u32 %s2881, 4
          %s2891 = int_to_ptr.vmem [resolvable:$true] %s2890
          %s2892 = sshll.u32 %s2889, 4
          %s2893 = int_to_ptr.hbm [resolvable:$true] %s2892
          %2898 = dma.vmem_to_hbm [thread:$0]  %s2891, 2048, %s2893, %s2878, 128, 128, 8
        $region92: #{tpu_custom_call.1} parent=71 // pred_fallthru
          _
      $region72: #{tpu_custom_call.1} parent=5 // pred_fallthru
        _
      %p2899 = scmp.le.s32.totalorder 2, %s25
      // Predicated region
      $region93: #{tpu_custom_call.1} parent=5 // pred_check
        %p2900 = pneg %p2899
      $region94: #{tpu_custom_call.1} parent=5 // pred_check_branch
        %2902 = sbr.rel (%p2900) target = $region96
      $region95: #{tpu_custom_call.1} parent=5 // pred_region
        %s2903 = ssub.s32 %s25, 2
        // Predicated region
        $region97: #{tpu_custom_call.1} parent=95 // pred_check
          %p2904 = pneg %p332
        $region98: #{tpu_custom_call.1} parent=95 // pred_check_branch
          %2906 = sbr.rel (%p2904) target = $region100
        $region99: #{tpu_custom_call.1} parent=95 // pred_region
          %s2907 = sand.u32 %s317, 1
          %s2908 = scalar_lea.sflag [#allocation4], %s2907
          %s2909 = sand.u32 %s317, 1
          %s2910 = smul.addr %s2909, 128
          %s2911 = scalar_lea.vmem [#allocation10], %s2910
          %2913 = dma.done %s2908, 2048
        $region100: #{tpu_custom_call.1} parent=95 // pred_fallthru
          _
      $region96: #{tpu_custom_call.1} parent=5 // pred_fallthru
        _
    $region6: #{tpu_custom_call.1} parent=1 // loop_footer
      %s29 = sadd.s32 1, %s25
    $region7: #{tpu_custom_call.1} parent=1 // loop_footer_branch
      %24 = sbr.rel target = $region3
    $region8: #{tpu_custom_call.1} parent=1 // loop_exit
      _
    %2914 = vsyncpa [#allocation3], 1
    %s2915 = scalar_lea.sflag [#allocation3], 1
    %2916 = vsyncpa %s2915, 1
    %2917 = vsyncpa [#allocation6], 1
    %2918 = vsyncpa [#allocation9], 1
    %2919 = vsyncpa [#allocation4], 1
    %s2920 = scalar_lea.sflag [#allocation4], 1
    %2921 = vsyncpa %s2920, 1

</llo_original>
